<compile_context>
chip_gen: v6e
topology: v6e:2x2x1
jax: 0.10.0
libtpu: 0.0.40
codegen_flags: <defaults>
</compile_context>

<pallas_src>
import jax
import jax.numpy as jnp
from jax.experimental import pallas as pl
from jax.experimental.pallas import tpu as pltpu


# ---------------------------------------------------------------------------
# Slab layouts (shared by the host-side packer and the in-kernel slicer)
# ---------------------------------------------------------------------------
def _wh_layout(D_enc, hidden, Dy, dec_hidden):
    """All weights whose first dim is D_enc==hidden, packed along N."""
    order = [("cf1_wz", hidden), ("cf2_w", D_enc), ("df1_wz", hidden),
             ("db2_w", D_enc), ("cb1_wz", hidden), ("cb2_w", D_enc),
             ("dec1_w", dec_hidden), ("df2_w", Dy)]
    offs, o = {}, 0
    for name, size in order:
        offs[name] = (o, size)
        o += size
    return offs, o


def _bias_layout(D_enc, hidden, Dy, dec_hidden, chw):
    """All bias rows packed along N (big, 128-aligned segment first)."""
    order = [("dec2_b", chw), ("dec1_b", dec_hidden), ("enc_b", D_enc),
             ("cf1_b", hidden), ("cf2_b", D_enc), ("df1_b", hidden),
             ("db1_b", hidden), ("db2_b", D_enc), ("cb1_b", hidden),
             ("cb2_b", D_enc), ("df2_b", Dy)]
    offs, o = {}, 0
    for name, size in order:
        offs[name] = (o, size)
        o += size
    return offs, o


# ---------------------------------------------------------------------------
# The single fused kernel
# ---------------------------------------------------------------------------
def _make_fused_kernel(B, C2, P, D_enc, hidden, wh_offs, bias_offs):
    f32, bf16 = jnp.float32, jnp.bfloat16

    def kernel(cols_ref, e_ref, y_ref,
               convwT_ref, convb_ref, wh_ref, db1wy_ref, wepack_ref,
               encw_ref, dec2w_ref, bias_ref,
               xflat_ref, ypred_ref, xenc_sc):

        def wh(name):                       # bf16 weight slab slice
            o, s = wh_offs[name]
            return wh_ref[:, pl.ds(o, s)]

        def bias(name):                     # f32 bias slab slice, shape (1, s)
            o, s = bias_offs[name]
            return bias_ref[:, pl.ds(o, s)]

        def mm(a, w):                       # bf16 MXU operands, f32 accumulate
            return jnp.dot(a.astype(bf16), w, preferred_element_type=f32)

        # ---- conditioning: the four e-projections as ONE lane-dense matmul
        e_bf = e_ref[...].astype(bf16)                          # [B, De]
        eproj = jnp.dot(e_bf, wepack_ref[...], preferred_element_type=f32)
        e_cf1 = eproj[:, 0 * hidden:1 * hidden]
        e_df1 = eproj[:, 1 * hidden:2 * hidden]
        e_db1 = eproj[:, 2 * hidden:3 * hidden]
        e_cb1 = eproj[:, 3 * hidden:4 * hidden]

        # ---- CConvEnc 'f': conv(3x3,s2) + ReLU + flatten + Linear, in VMEM
        conv_wT = convwT_ref[...]                               # [C2, C*9] bf16
        conv_b = convb_ref[...]                                 # [C2, 1]   f32
        for b in range(B):                                      # static unroll
            cols_b = cols_ref[b]                                # [C*9, P]  bf16
            conv_t = jnp.dot(conv_wT, cols_b, preferred_element_type=f32)
            r_t = jnp.maximum(conv_t + conv_b, 0.0).astype(bf16)   # [C2, P]
            acc = jnp.zeros((1, D_enc), f32)
            for c in range(C2):     # flatten+Linear folded: per-channel rows
                acc = acc + jnp.dot(r_t[c:c + 1, :],
                                    encw_ref[pl.ds(c * P, P), :],
                                    preferred_element_type=f32)
            xenc_sc[pl.ds(b, 1), :] = acc
        x_enc = xenc_sc[...] + bias("enc_b")                    # [B, D_enc]

        # ---- PepperVarCore 'f' (mean head) ----
        h = jnp.maximum(mm(x_enc, wh("cf1_wz")) + e_cf1 + bias("cf1_b"), 0.0)
        x_enc = mm(h, wh("cf2_w")) + bias("cf2_b")

        # ---- CConvDec 'f' -> y_ ----
        h = jnp.maximum(mm(x_enc, wh("df1_wz")) + e_df1 + bias("df1_b"), 0.0)
        y_pred = mm(h, wh("df2_w")) + bias("df2_b")
        ypred_ref[...] = y_pred

        # ---- `y = y_ if True in torch.isnan(y) else y` (global NaN gate) ----
        y_tgt = y_ref[...]
        nan_flags = jnp.where(jnp.isnan(y_tgt), 1.0, 0.0)
        has_nan = jnp.sum(nan_flags, axis=None, keepdims=True) > 0.0   # (1,1)
        y_used = jnp.where(has_nan, y_pred, y_tgt)

        # ---- CConvDec 'b' -> y_enc ----
        h = jnp.maximum(mm(y_used, db1wy_ref[...]) + e_db1 + bias("db1_b"), 0.0)
        y_enc = mm(h, wh("db2_w")) + bias("db2_b")

        # ---- PepperVarCore 'b' ----
        h = jnp.maximum(mm(y_enc, wh("cb1_wz")) + e_cb1 + bias("cb1_b"), 0.0)
        y_enc = mm(h, wh("cb2_w")) + bias("cb2_b")

        # ---- CConvEnc 'b' (image decoder; lane-dense N = C*H*W output) ----
        h = jnp.maximum(mm(y_enc, wh("dec1_w")) + bias("dec1_b"), 0.0)
        xflat_ref[...] = mm(h, dec2w_ref[...]) + bias("dec2_b")

    return kernel


# ---------------------------------------------------------------------------
# Deterministic parameter construction (synthetic, no checkpoint), packed.
# weights: bf16 (MXU operands)   biases: f32 rows, packed in one slab
# ---------------------------------------------------------------------------
def init_params(key, C, H, W, C2, D_enc, Dy, De, hidden, dec_hidden):
    assert D_enc == hidden, "weight-slab packing assumes D_enc == hidden"
    H2, W2 = H // 2, W // 2
    P = H2 * W2
    chw = C * H * W
    ks = iter(jax.random.split(key, 64))

    def w(shape, scale=0.1):
        return (scale * jax.random.normal(next(ks), shape, jnp.float32)
                ).astype(jnp.bfloat16)

    def brow(n, scale=0.1):
        return scale * jax.random.normal(next(ks), (1, n), jnp.float32)

    conv_wT = w((C2, C * 9))                                   # [C2, K]
    conv_b = 0.1 * jax.random.normal(next(ks), (C2, 1), jnp.float32)
    enc_w = w((C2 * P, D_enc))            # rows ordered (channel-major, pos)

    pieces_w = {
        "cf1_wz": w((D_enc, hidden)), "cf2_w": w((hidden, D_enc)),
        "df1_wz": w((D_enc, hidden)), "db2_w": w((hidden, D_enc)),
        "cb1_wz": w((D_enc, hidden)), "cb2_w": w((hidden, D_enc)),
        "dec1_w": w((D_enc, dec_hidden)), "df2_w": w((hidden, Dy)),
    }
    wh_offs, _ = _wh_layout(D_enc, hidden, Dy, dec_hidden)
    w_h = jnp.concatenate([pieces_w[n] for n in wh_offs], axis=1)

    # packed e-projections, order: cf1 | df1 | db1 | cb1
    we_pack = jnp.concatenate([w((De, hidden)) for _ in range(4)], axis=1)
    db1_wy = w((Dy, hidden))
    dec2_w = w((dec_hidden, chw))

    pieces_b = {
        "dec2_b": brow(chw), "dec1_b": brow(dec_hidden), "enc_b": brow(D_enc),
        "cf1_b": brow(hidden), "cf2_b": brow(D_enc), "df1_b": brow(hidden),
        "db1_b": brow(hidden), "db2_b": brow(D_enc), "cb1_b": brow(hidden),
        "cb2_b": brow(D_enc), "df2_b": brow(Dy),
    }
    bias_offs, _ = _bias_layout(D_enc, hidden, Dy, dec_hidden, chw)
    bias_slab = jnp.concatenate([pieces_b[n] for n in bias_offs], axis=1)

    return {
        "conv_wT": conv_wT, "conv_b": conv_b, "enc_w": enc_w,
        "w_h": w_h, "we_pack": we_pack, "db1_wy": db1_wy,
        "dec2_w": dec2_w, "bias": bias_slab,
    }


# ---------------------------------------------------------------------------
# PepperNetCConvVAE.forward
# ---------------------------------------------------------------------------
def peppernet_cconv_vae_forward(params, x, y, e):
    B, C, H, W = x.shape
    C2 = params["conv_wT"].shape[0]
    D_enc = params["enc_w"].shape[1]
    hidden = params["we_pack"].shape[1] // 4
    Dy = params["db1_wy"].shape[0]
    dec_hidden = params["dec2_w"].shape[0]
    chw = params["dec2_w"].shape[1]

    # One XLA op chain: patch extraction (3x3 / s2 / p1) + trailing-dim
    # collapse + bf16 cast.  No transpose, no extra HBM bounce.
    p = jax.lax.conv_general_dilated_patches(
        x, filter_shape=(3, 3), window_strides=(2, 2),
        padding=((1, 1), (1, 1)))                     # [B, C*9, H2, W2]
    H2, W2 = p.shape[2], p.shape[3]
    P = H2 * W2
    cols = p.reshape(B, C * 9, P).astype(jnp.bfloat16)

    wh_offs, _ = _wh_layout(D_enc, hidden, Dy, dec_hidden)
    bias_offs, _ = _bias_layout(D_enc, hidden, Dy, dec_hidden, chw)

    kernel = _make_fused_kernel(B, C2, P, D_enc, hidden, wh_offs, bias_offs)

    x_flat, y_pred = pl.pallas_call(
        kernel,
        out_shape=(jax.ShapeDtypeStruct((B, chw), jnp.float32),
                   jax.ShapeDtypeStruct((B, Dy), jnp.float32)),
        scratch_shapes=[pltpu.VMEM((B, D_enc), jnp.float32)],
        # TODO(synk): add a "parallel" batch grid axis + decoder N tiling +
        # explicit vmem_limit_bytes when B / C*H*W grow to production size.
    )(cols, e, y,
      params["conv_wT"], params["conv_b"], params["w_h"], params["db1_wy"],
      params["we_pack"], params["enc_w"], params["dec2_w"], params["bias"])

    x_ = x_flat.reshape(B, C, H, W)
    # TODO(synk): third return is the opaque aux of conv_enc('b'); unspecified.
    return x_, y_pred, None


# ---------------------------------------------------------------------------
if __name__ == "__main__":
    B, C, H, W = 2, 4, 16, 16      # x: NCHW
    Dy = 8                         # target / conv_dec output dim
    De = 4                         # conditioning 'e' dim
    D_enc, hidden, dec_hidden, C2 = 32, 32, 64, 8

    params = init_params(jax.random.PRNGKey(42), C, H, W,
                         C2, D_enc, Dy, De, hidden, dec_hidden)

    k = jax.random.PRNGKey(0)
    kx, ky, ke = jax.random.split(k, 3)
    x = jax.random.normal(kx, (B, C, H, W), dtype=jnp.float32)
    y = jax.random.normal(ky, (B, Dy), dtype=jnp.float32)
    e = jax.random.normal(ke, (B, De), dtype=jnp.float32)

    fwd = jax.jit(peppernet_cconv_vae_forward)
    x_out, y_out, aux = fwd(params, x, y, e)
    jax.block_until_ready((x_out, y_out))

    assert x_out.shape == (B, C, H, W)
    assert y_out.shape == (B, Dy)
    assert aux is None
    assert not bool(jnp.any(jnp.isnan(x_out)))
    assert not bool(jnp.any(jnp.isnan(y_out)))
    print("KERNEL_OK")
</pallas_src>

<mosaic_0001>
module attributes {stable_mosaic.version = 11 : i64} {
  func.func @kernel(%arg0: memref<2x36x64xbf16, #tpu.memory_space<vmem>>, %arg1: memref<2x4xf32, #tpu.memory_space<vmem>>, %arg2: memref<2x8xf32, #tpu.memory_space<vmem>>, %arg3: memref<8x36xbf16, #tpu.memory_space<vmem>>, %arg4: memref<8x1xf32, #tpu.memory_space<vmem>>, %arg5: memref<32x264xbf16, #tpu.memory_space<vmem>>, %arg6: memref<8x32xbf16, #tpu.memory_space<vmem>>, %arg7: memref<4x128xbf16, #tpu.memory_space<vmem>>, %arg8: memref<512x32xbf16, #tpu.memory_space<vmem>>, %arg9: memref<64x1024xbf16, #tpu.memory_space<vmem>>, %arg10: memref<1x1352xf32, #tpu.memory_space<vmem>>, %arg11: memref<2x1024xf32, #tpu.memory_space<vmem>>, %arg12: memref<2x8xf32, #tpu.memory_space<vmem>>, %arg13: memref<2x32xf32, #tpu.memory_space<vmem>>) attributes {dimension_semantics = [], scalar_prefetch = 0 : i64, scratch_operands = 1 : i64, tpu.core_type = #tpu.core_type<tc>} {
    %c0 = arith.constant 0 : index
    %c0_0 = arith.constant 0 : index
    %0 = vector.load %arg1[%c0, %c0_0] : memref<2x4xf32, #tpu.memory_space<vmem>>, vector<2x4xf32>
    %1 = arith.truncf %0 : vector<2x4xf32> to vector<2x4xbf16>
    %c0_1 = arith.constant 0 : index
    %c0_2 = arith.constant 0 : index
    %2 = vector.load %arg7[%c0_1, %c0_2] : memref<4x128xbf16, #tpu.memory_space<vmem>>, vector<4x128xbf16>
    %cst = arith.constant dense<0.000000e+00> : vector<2x128xf32>
    %3 = tpu.matmul %1, %2, %cst {dimension_numbers = #tpu.dot_dimension_numbers<[1], [0], [0], [1], [0, 0, 1, 1], [], []>} : vector<2x4xbf16>, vector<4x128xbf16>, vector<2x128xf32> -> vector<2x128xf32>
    %4 = vector.extract_strided_slice %3 {offsets = [0, 0], sizes = [2, 32], strides = [1, 1]} : vector<2x128xf32> to vector<2x32xf32>
    %5 = vector.extract_strided_slice %3 {offsets = [0, 32], sizes = [2, 32], strides = [1, 1]} : vector<2x128xf32> to vector<2x32xf32>
    %6 = vector.extract_strided_slice %3 {offsets = [0, 64], sizes = [2, 32], strides = [1, 1]} : vector<2x128xf32> to vector<2x32xf32>
    %7 = vector.extract_strided_slice %3 {offsets = [0, 96], sizes = [2, 32], strides = [1, 1]} : vector<2x128xf32> to vector<2x32xf32>
    %c0_3 = arith.constant 0 : index
    %c0_4 = arith.constant 0 : index
    %8 = vector.load %arg3[%c0_3, %c0_4] : memref<8x36xbf16, #tpu.memory_space<vmem>>, vector<8x36xbf16>
    %c0_5 = arith.constant 0 : index
    %c0_6 = arith.constant 0 : index
    %9 = vector.load %arg4[%c0_5, %c0_6] : memref<8x1xf32, #tpu.memory_space<vmem>>, vector<8x1xf32>
    %c0_7 = arith.constant 0 : index
    %c0_8 = arith.constant 0 : index
    %c0_9 = arith.constant 0 : index
    %10 = vector.load %arg0[%c0_7, %c0_8, %c0_9] : memref<2x36x64xbf16, #tpu.memory_space<vmem>>, vector<1x36x64xbf16>
    %11 = vector.shape_cast %10 : vector<1x36x64xbf16> to vector<36x64xbf16>
    %cst_10 = arith.constant dense<0.000000e+00> : vector<8x64xf32>
    %12 = tpu.matmul %8, %11, %cst_10 {dimension_numbers = #tpu.dot_dimension_numbers<[1], [0], [0], [1], [0, 0, 1, 1], [], []>} : vector<8x36xbf16>, vector<36x64xbf16>, vector<8x64xf32> -> vector<8x64xf32>
    %13 = vector.broadcast %9 : vector<8x1xf32> to vector<8x64xf32>
    %14 = arith.addf %12, %13 : vector<8x64xf32>
    %cst_11 = arith.constant 0.000000e+00 : f32
    %15 = vector.broadcast %cst_11 : f32 to vector<8x64xf32>
    %16 = arith.maximumf %14, %15 : vector<8x64xf32>
    %17 = arith.truncf %16 : vector<8x64xf32> to vector<8x64xbf16>
    %cst_12 = arith.constant 0.000000e+00 : f32
    %18 = vector.broadcast %cst_12 : f32 to vector<1x32xf32>
    %19 = vector.extract_strided_slice %17 {offsets = [0, 0], sizes = [1, 64], strides = [1, 1]} : vector<8x64xbf16> to vector<1x64xbf16>
    %c0_13 = arith.constant 0 : index
    %c0_14 = arith.constant 0 : index
    %20 = vector.load %arg8[%c0_13, %c0_14] : memref<512x32xbf16, #tpu.memory_space<vmem>>, vector<64x32xbf16>
    %cst_15 = arith.constant dense<0.000000e+00> : vector<1x32xf32>
    %21 = tpu.matmul %19, %20, %cst_15 {dimension_numbers = #tpu.dot_dimension_numbers<[1], [0], [0], [1], [0, 0, 1, 1], [], []>} : vector<1x64xbf16>, vector<64x32xbf16>, vector<1x32xf32> -> vector<1x32xf32>
    %22 = arith.addf %18, %21 : vector<1x32xf32>
    %23 = vector.extract_strided_slice %17 {offsets = [1, 0], sizes = [1, 64], strides = [1, 1]} : vector<8x64xbf16> to vector<1x64xbf16>
    %c64 = arith.constant 64 : index
    %c0_16 = arith.constant 0 : index
    %24 = vector.load %arg8[%c64, %c0_16] : memref<512x32xbf16, #tpu.memory_space<vmem>>, vector<64x32xbf16>
    %cst_17 = arith.constant dense<0.000000e+00> : vector<1x32xf32>
    %25 = tpu.matmul %23, %24, %cst_17 {dimension_numbers = #tpu.dot_dimension_numbers<[1], [0], [0], [1], [0, 0, 1, 1], [], []>} : vector<1x64xbf16>, vector<64x32xbf16>, vector<1x32xf32> -> vector<1x32xf32>
    %26 = arith.addf %22, %25 : vector<1x32xf32>
    %27 = vector.extract_strided_slice %17 {offsets = [2, 0], sizes = [1, 64], strides = [1, 1]} : vector<8x64xbf16> to vector<1x64xbf16>
    %c128 = arith.constant 128 : index
    %c0_18 = arith.constant 0 : index
    %28 = vector.load %arg8[%c128, %c0_18] : memref<512x32xbf16, #tpu.memory_space<vmem>>, vector<64x32xbf16>
    %cst_19 = arith.constant dense<0.000000e+00> : vector<1x32xf32>
    %29 = tpu.matmul %27, %28, %cst_19 {dimension_numbers = #tpu.dot_dimension_numbers<[1], [0], [0], [1], [0, 0, 1, 1], [], []>} : vector<1x64xbf16>, vector<64x32xbf16>, vector<1x32xf32> -> vector<1x32xf32>
    %30 = arith.addf %26, %29 : vector<1x32xf32>
    %31 = vector.extract_strided_slice %17 {offsets = [3, 0], sizes = [1, 64], strides = [1, 1]} : vector<8x64xbf16> to vector<1x64xbf16>
    %c192 = arith.constant 192 : index
    %c0_20 = arith.constant 0 : index
    %32 = vector.load %arg8[%c192, %c0_20] : memref<512x32xbf16, #tpu.memory_space<vmem>>, vector<64x32xbf16>
    %cst_21 = arith.constant dense<0.000000e+00> : vector<1x32xf32>
    %33 = tpu.matmul %31, %32, %cst_21 {dimension_numbers = #tpu.dot_dimension_numbers<[1], [0], [0], [1], [0, 0, 1, 1], [], []>} : vector<1x64xbf16>, vector<64x32xbf16>, vector<1x32xf32> -> vector<1x32xf32>
    %34 = arith.addf %30, %33 : vector<1x32xf32>
    %35 = vector.extract_strided_slice %17 {offsets = [4, 0], sizes = [1, 64], strides = [1, 1]} : vector<8x64xbf16> to vector<1x64xbf16>
    %c256 = arith.constant 256 : index
    %c0_22 = arith.constant 0 : index
    %36 = vector.load %arg8[%c256, %c0_22] : memref<512x32xbf16, #tpu.memory_space<vmem>>, vector<64x32xbf16>
    %cst_23 = arith.constant dense<0.000000e+00> : vector<1x32xf32>
    %37 = tpu.matmul %35, %36, %cst_23 {dimension_numbers = #tpu.dot_dimension_numbers<[1], [0], [0], [1], [0, 0, 1, 1], [], []>} : vector<1x64xbf16>, vector<64x32xbf16>, vector<1x32xf32> -> vector<1x32xf32>
    %38 = arith.addf %34, %37 : vector<1x32xf32>
    %39 = vector.extract_strided_slice %17 {offsets = [5, 0], sizes = [1, 64], strides = [1, 1]} : vector<8x64xbf16> to vector<1x64xbf16>
    %c320 = arith.constant 320 : index
    %c0_24 = arith.constant 0 : index
    %40 = vector.load %arg8[%c320, %c0_24] : memref<512x32xbf16, #tpu.memory_space<vmem>>, vector<64x32xbf16>
    %cst_25 = arith.constant dense<0.000000e+00> : vector<1x32xf32>
    %41 = tpu.matmul %39, %40, %cst_25 {dimension_numbers = #tpu.dot_dimension_numbers<[1], [0], [0], [1], [0, 0, 1, 1], [], []>} : vector<1x64xbf16>, vector<64x32xbf16>, vector<1x32xf32> -> vector<1x32xf32>
    %42 = arith.addf %38, %41 : vector<1x32xf32>
    %43 = vector.extract_strided_slice %17 {offsets = [6, 0], sizes = [1, 64], strides = [1, 1]} : vector<8x64xbf16> to vector<1x64xbf16>
    %c384 = arith.constant 384 : index
    %c0_26 = arith.constant 0 : index
    %44 = vector.load %arg8[%c384, %c0_26] : memref<512x32xbf16, #tpu.memory_space<vmem>>, vector<64x32xbf16>
    %cst_27 = arith.constant dense<0.000000e+00> : vector<1x32xf32>
    %45 = tpu.matmul %43, %44, %cst_27 {dimension_numbers = #tpu.dot_dimension_numbers<[1], [0], [0], [1], [0, 0, 1, 1], [], []>} : vector<1x64xbf16>, vector<64x32xbf16>, vector<1x32xf32> -> vector<1x32xf32>
    %46 = arith.addf %42, %45 : vector<1x32xf32>
    %47 = vector.extract_strided_slice %17 {offsets = [7, 0], sizes = [1, 64], strides = [1, 1]} : vector<8x64xbf16> to vector<1x64xbf16>
    %c448 = arith.constant 448 : index
    %c0_28 = arith.constant 0 : index
    %48 = vector.load %arg8[%c448, %c0_28] : memref<512x32xbf16, #tpu.memory_space<vmem>>, vector<64x32xbf16>
    %cst_29 = arith.constant dense<0.000000e+00> : vector<1x32xf32>
    %49 = tpu.matmul %47, %48, %cst_29 {dimension_numbers = #tpu.dot_dimension_numbers<[1], [0], [0], [1], [0, 0, 1, 1], [], []>} : vector<1x64xbf16>, vector<64x32xbf16>, vector<1x32xf32> -> vector<1x32xf32>
    %50 = arith.addf %46, %49 : vector<1x32xf32>
    %c0_30 = arith.constant 0 : index
    %c0_31 = arith.constant 0 : index
    %51 = vector.load %arg13[%c0_30, %c0_31] : memref<2x32xf32, #tpu.memory_space<vmem>>, vector<1x32xf32>
    tpu.vector_store %arg13[%c0_30, %c0_31], %50 {strides = array<i32>} : memref<2x32xf32, #tpu.memory_space<vmem>>, vector<1x32xf32>,
    %c1 = arith.constant 1 : index
    %c0_32 = arith.constant 0 : index
    %c0_33 = arith.constant 0 : index
    %52 = vector.load %arg0[%c1, %c0_32, %c0_33] : memref<2x36x64xbf16, #tpu.memory_space<vmem>>, vector<1x36x64xbf16>
    %53 = vector.shape_cast %52 : vector<1x36x64xbf16> to vector<36x64xbf16>
    %cst_34 = arith.constant dense<0.000000e+00> : vector<8x64xf32>
    %54 = tpu.matmul %8, %53, %cst_34 {dimension_numbers = #tpu.dot_dimension_numbers<[1], [0], [0], [1], [0, 0, 1, 1], [], []>} : vector<8x36xbf16>, vector<36x64xbf16>, vector<8x64xf32> -> vector<8x64xf32>
    %55 = vector.broadcast %9 : vector<8x1xf32> to vector<8x64xf32>
    %56 = arith.addf %54, %55 : vector<8x64xf32>
    %cst_35 = arith.constant 0.000000e+00 : f32
    %57 = vector.broadcast %cst_35 : f32 to vector<8x64xf32>
    %58 = arith.maximumf %56, %57 : vector<8x64xf32>
    %59 = arith.truncf %58 : vector<8x64xf32> to vector<8x64xbf16>
    %cst_36 = arith.constant 0.000000e+00 : f32
    %60 = vector.broadcast %cst_36 : f32 to vector<1x32xf32>
    %61 = vector.extract_strided_slice %59 {offsets = [0, 0], sizes = [1, 64], strides = [1, 1]} : vector<8x64xbf16> to vector<1x64xbf16>
    %c0_37 = arith.constant 0 : index
    %c0_38 = arith.constant 0 : index
    %62 = vector.load %arg8[%c0_37, %c0_38] : memref<512x32xbf16, #tpu.memory_space<vmem>>, vector<64x32xbf16>
    %cst_39 = arith.constant dense<0.000000e+00> : vector<1x32xf32>
    %63 = tpu.matmul %61, %62, %cst_39 {dimension_numbers = #tpu.dot_dimension_numbers<[1], [0], [0], [1], [0, 0, 1, 1], [], []>} : vector<1x64xbf16>, vector<64x32xbf16>, vector<1x32xf32> -> vector<1x32xf32>
    %64 = arith.addf %60, %63 : vector<1x32xf32>
    %65 = vector.extract_strided_slice %59 {offsets = [1, 0], sizes = [1, 64], strides = [1, 1]} : vector<8x64xbf16> to vector<1x64xbf16>
    %c64_40 = arith.constant 64 : index
    %c0_41 = arith.constant 0 : index
    %66 = vector.load %arg8[%c64_40, %c0_41] : memref<512x32xbf16, #tpu.memory_space<vmem>>, vector<64x32xbf16>
    %cst_42 = arith.constant dense<0.000000e+00> : vector<1x32xf32>
    %67 = tpu.matmul %65, %66, %cst_42 {dimension_numbers = #tpu.dot_dimension_numbers<[1], [0], [0], [1], [0, 0, 1, 1], [], []>} : vector<1x64xbf16>, vector<64x32xbf16>, vector<1x32xf32> -> vector<1x32xf32>
    %68 = arith.addf %64, %67 : vector<1x32xf32>
    %69 = vector.extract_strided_slice %59 {offsets = [2, 0], sizes = [1, 64], strides = [1, 1]} : vector<8x64xbf16> to vector<1x64xbf16>
    %c128_43 = arith.constant 128 : index
    %c0_44 = arith.constant 0 : index
    %70 = vector.load %arg8[%c128_43, %c0_44] : memref<512x32xbf16, #tpu.memory_space<vmem>>, vector<64x32xbf16>
    %cst_45 = arith.constant dense<0.000000e+00> : vector<1x32xf32>
    %71 = tpu.matmul %69, %70, %cst_45 {dimension_numbers = #tpu.dot_dimension_numbers<[1], [0], [0], [1], [0, 0, 1, 1], [], []>} : vector<1x64xbf16>, vector<64x32xbf16>, vector<1x32xf32> -> vector<1x32xf32>
    %72 = arith.addf %68, %71 : vector<1x32xf32>
    %73 = vector.extract_strided_slice %59 {offsets = [3, 0], sizes = [1, 64], strides = [1, 1]} : vector<8x64xbf16> to vector<1x64xbf16>
    %c192_46 = arith.constant 192 : index
    %c0_47 = arith.constant 0 : index
    %74 = vector.load %arg8[%c192_46, %c0_47] : memref<512x32xbf16, #tpu.memory_space<vmem>>, vector<64x32xbf16>
    %cst_48 = arith.constant dense<0.000000e+00> : vector<1x32xf32>
    %75 = tpu.matmul %73, %74, %cst_48 {dimension_numbers = #tpu.dot_dimension_numbers<[1], [0], [0], [1], [0, 0, 1, 1], [], []>} : vector<1x64xbf16>, vector<64x32xbf16>, vector<1x32xf32> -> vector<1x32xf32>
    %76 = arith.addf %72, %75 : vector<1x32xf32>
    %77 = vector.extract_strided_slice %59 {offsets = [4, 0], sizes = [1, 64], strides = [1, 1]} : vector<8x64xbf16> to vector<1x64xbf16>
    %c256_49 = arith.constant 256 : index
    %c0_50 = arith.constant 0 : index
    %78 = vector.load %arg8[%c256_49, %c0_50] : memref<512x32xbf16, #tpu.memory_space<vmem>>, vector<64x32xbf16>
    %cst_51 = arith.constant dense<0.000000e+00> : vector<1x32xf32>
    %79 = tpu.matmul %77, %78, %cst_51 {dimension_numbers = #tpu.dot_dimension_numbers<[1], [0], [0], [1], [0, 0, 1, 1], [], []>} : vector<1x64xbf16>, vector<64x32xbf16>, vector<1x32xf32> -> vector<1x32xf32>
    %80 = arith.addf %76, %79 : vector<1x32xf32>
    %81 = vector.extract_strided_slice %59 {offsets = [5, 0], sizes = [1, 64], strides = [1, 1]} : vector<8x64xbf16> to vector<1x64xbf16>
    %c320_52 = arith.constant 320 : index
    %c0_53 = arith.constant 0 : index
    %82 = vector.load %arg8[%c320_52, %c0_53] : memref<512x32xbf16, #tpu.memory_space<vmem>>, vector<64x32xbf16>
    %cst_54 = arith.constant dense<0.000000e+00> : vector<1x32xf32>
    %83 = tpu.matmul %81, %82, %cst_54 {dimension_numbers = #tpu.dot_dimension_numbers<[1], [0], [0], [1], [0, 0, 1, 1], [], []>} : vector<1x64xbf16>, vector<64x32xbf16>, vector<1x32xf32> -> vector<1x32xf32>
    %84 = arith.addf %80, %83 : vector<1x32xf32>
    %85 = vector.extract_strided_slice %59 {offsets = [6, 0], sizes = [1, 64], strides = [1, 1]} : vector<8x64xbf16> to vector<1x64xbf16>
    %c384_55 = arith.constant 384 : index
    %c0_56 = arith.constant 0 : index
    %86 = vector.load %arg8[%c384_55, %c0_56] : memref<512x32xbf16, #tpu.memory_space<vmem>>, vector<64x32xbf16>
    %cst_57 = arith.constant dense<0.000000e+00> : vector<1x32xf32>
    %87 = tpu.matmul %85, %86, %cst_57 {dimension_numbers = #tpu.dot_dimension_numbers<[1], [0], [0], [1], [0, 0, 1, 1], [], []>} : vector<1x64xbf16>, vector<64x32xbf16>, vector<1x32xf32> -> vector<1x32xf32>
    %88 = arith.addf %84, %87 : vector<1x32xf32>
    %89 = vector.extract_strided_slice %59 {offsets = [7, 0], sizes = [1, 64], strides = [1, 1]} : vector<8x64xbf16> to vector<1x64xbf16>
    %c448_58 = arith.constant 448 : index
    %c0_59 = arith.constant 0 : index
    %90 = vector.load %arg8[%c448_58, %c0_59] : memref<512x32xbf16, #tpu.memory_space<vmem>>, vector<64x32xbf16>
    %cst_60 = arith.constant dense<0.000000e+00> : vector<1x32xf32>
    %91 = tpu.matmul %89, %90, %cst_60 {dimension_numbers = #tpu.dot_dimension_numbers<[1], [0], [0], [1], [0, 0, 1, 1], [], []>} : vector<1x64xbf16>, vector<64x32xbf16>, vector<1x32xf32> -> vector<1x32xf32>
    %92 = arith.addf %88, %91 : vector<1x32xf32>
    %c1_61 = arith.constant 1 : index
    %c0_62 = arith.constant 0 : index
    %93 = vector.load %arg13[%c1_61, %c0_62] : memref<2x32xf32, #tpu.memory_space<vmem>>, vector<1x32xf32>
    tpu.vector_store %arg13[%c1_61, %c0_62], %92 {strides = array<i32>} : memref<2x32xf32, #tpu.memory_space<vmem>>, vector<1x32xf32>,
    %c0_63 = arith.constant 0 : index
    %c0_64 = arith.constant 0 : index
    %94 = vector.load %arg13[%c0_63, %c0_64] : memref<2x32xf32, #tpu.memory_space<vmem>>, vector<2x32xf32>
    %c0_65 = arith.constant 0 : index
    %c1088 = arith.constant 1088 : index
    %95 = vector.load %arg10[%c0_65, %c1088] : memref<1x1352xf32, #tpu.memory_space<vmem>>, vector<1x32xf32>
    %96 = vector.broadcast %95 : vector<1x32xf32> to vector<2x32xf32>
    %97 = arith.addf %94, %96 : vector<2x32xf32>
    %c0_66 = arith.constant 0 : index
    %c0_67 = arith.constant 0 : index
    %98 = vector.load %arg5[%c0_66, %c0_67] : memref<32x264xbf16, #tpu.memory_space<vmem>>, vector<32x32xbf16>
    %99 = arith.truncf %97 : vector<2x32xf32> to vector<2x32xbf16>
    %cst_68 = arith.constant dense<0.000000e+00> : vector<2x32xf32>
    %100 = tpu.matmul %99, %98, %cst_68 {dimension_numbers = #tpu.dot_dimension_numbers<[1], [0], [0], [1], [0, 0, 1, 1], [], []>} : vector<2x32xbf16>, vector<32x32xbf16>, vector<2x32xf32> -> vector<2x32xf32>
    %101 = arith.addf %100, %4 : vector<2x32xf32>
    %c0_69 = arith.constant 0 : index
    %c1120 = arith.constant 1120 : index
    %102 = vector.load %arg10[%c0_69, %c1120] : memref<1x1352xf32, #tpu.memory_space<vmem>>, vector<1x32xf32>
    %103 = vector.broadcast %102 : vector<1x32xf32> to vector<2x32xf32>
    %104 = arith.addf %101, %103 : vector<2x32xf32>
    %cst_70 = arith.constant 0.000000e+00 : f32
    %105 = vector.broadcast %cst_70 : f32 to vector<2x32xf32>
    %106 = arith.maximumf %104, %105 : vector<2x32xf32>
    %c0_71 = arith.constant 0 : index
    %c32 = arith.constant 32 : index
    %107 = vector.load %arg5[%c0_71, %c32] : memref<32x264xbf16, #tpu.memory_space<vmem>>, vector<32x32xbf16>
    %108 = arith.truncf %106 : vector<2x32xf32> to vector<2x32xbf16>
    %cst_72 = arith.constant dense<0.000000e+00> : vector<2x32xf32>
    %109 = tpu.matmul %108, %107, %cst_72 {dimension_numbers = #tpu.dot_dimension_numbers<[1], [0], [0], [1], [0, 0, 1, 1], [], []>} : vector<2x32xbf16>, vector<32x32xbf16>, vector<2x32xf32> -> vector<2x32xf32>
    %c0_73 = arith.constant 0 : index
    %c1152 = arith.constant 1152 : index
    %110 = vector.load %arg10[%c0_73, %c1152] : memref<1x1352xf32, #tpu.memory_space<vmem>>, vector<1x32xf32>
    %111 = vector.broadcast %110 : vector<1x32xf32> to vector<2x32xf32>
    %112 = arith.addf %109, %111 : vector<2x32xf32>
    %c0_74 = arith.constant 0 : index
    %c64_75 = arith.constant 64 : index
    %113 = vector.load %arg5[%c0_74, %c64_75] : memref<32x264xbf16, #tpu.memory_space<vmem>>, vector<32x32xbf16>
    %114 = arith.truncf %112 : vector<2x32xf32> to vector<2x32xbf16>
    %cst_76 = arith.constant dense<0.000000e+00> : vector<2x32xf32>
    %115 = tpu.matmul %114, %113, %cst_76 {dimension_numbers = #tpu.dot_dimension_numbers<[1], [0], [0], [1], [0, 0, 1, 1], [], []>} : vector<2x32xbf16>, vector<32x32xbf16>, vector<2x32xf32> -> vector<2x32xf32>
    %116 = arith.addf %115, %5 : vector<2x32xf32>
    %c0_77 = arith.constant 0 : index
    %c1184 = arith.constant 1184 : index
    %117 = vector.load %arg10[%c0_77, %c1184] : memref<1x1352xf32, #tpu.memory_space<vmem>>, vector<1x32xf32>
    %118 = vector.broadcast %117 : vector<1x32xf32> to vector<2x32xf32>
    %119 = arith.addf %116, %118 : vector<2x32xf32>
    %cst_78 = arith.constant 0.000000e+00 : f32
    %120 = vector.broadcast %cst_78 : f32 to vector<2x32xf32>
    %121 = arith.maximumf %119, %120 : vector<2x32xf32>
    %c0_79 = arith.constant 0 : index
    %c256_80 = arith.constant 256 : index
    %122 = vector.load %arg5[%c0_79, %c256_80] : memref<32x264xbf16, #tpu.memory_space<vmem>>, vector<32x8xbf16>
    %123 = arith.truncf %121 : vector<2x32xf32> to vector<2x32xbf16>
    %cst_81 = arith.constant dense<0.000000e+00> : vector<2x8xf32>
    %124 = tpu.matmul %123, %122, %cst_81 {dimension_numbers = #tpu.dot_dimension_numbers<[1], [0], [0], [1], [0, 0, 1, 1], [], []>} : vector<2x32xbf16>, vector<32x8xbf16>, vector<2x8xf32> -> vector<2x8xf32>
    %c0_82 = arith.constant 0 : index
    %c1344 = arith.constant 1344 : index
    %125 = vector.load %arg10[%c0_82, %c1344] : memref<1x1352xf32, #tpu.memory_space<vmem>>, vector<1x8xf32>
    %126 = vector.broadcast %125 : vector<1x8xf32> to vector<2x8xf32>
    %127 = arith.addf %124, %126 : vector<2x8xf32>
    %c0_83 = arith.constant 0 : index
    %c0_84 = arith.constant 0 : index
    %128 = vector.load %arg12[%c0_83, %c0_84] : memref<2x8xf32, #tpu.memory_space<vmem>>, vector<2x8xf32>
    tpu.vector_store %arg12[%c0_83, %c0_84], %127 {strides = array<i32>} : memref<2x8xf32, #tpu.memory_space<vmem>>, vector<2x8xf32>,
    %c0_85 = arith.constant 0 : index
    %c0_86 = arith.constant 0 : index
    %129 = vector.load %arg2[%c0_85, %c0_86] : memref<2x8xf32, #tpu.memory_space<vmem>>, vector<2x8xf32>
    %130 = arith.cmpf one, %129, %129 : vector<2x8xf32>
    %cst_87 = arith.constant 1.000000e+00 : f32
    %cst_88 = arith.constant 0.000000e+00 : f32
    %131 = vector.broadcast %cst_87 : f32 to vector<2x8xf32>
    %132 = vector.broadcast %cst_88 : f32 to vector<2x8xf32>
    %133 = arith.select %130, %131, %132 : vector<2x8xi1>, vector<2x8xf32>
    %134 = vector.shape_cast %133 : vector<2x8xf32> to vector<1x2x8xf32>
    %cst_89 = arith.constant dense<0.000000e+00> : vector<1xf32>
    %135 = vector.multi_reduction <add>, %134, %cst_89 [1, 2] : vector<1x2x8xf32> to vector<1xf32>
    %136 = vector.shape_cast %135 : vector<1xf32> to vector<1x1x1xf32>
    %137 = vector.extract %136[0, 0, 0] : f32 from vector<1x1x1xf32>
    %138 = vector.broadcast %137 : f32 to vector<1x1xf32>
    %cst_90 = arith.constant 0.000000e+00 : f32
    %139 = vector.broadcast %cst_90 : f32 to vector<1x1xf32>
    %140 = arith.cmpf ogt, %138, %139 : vector<1x1xf32>
    %141 = vector.shape_cast %140 : vector<1x1xi1> to vector<1x1xi1>
    %142 = vector.broadcast %141 : vector<1x1xi1> to vector<2x8xi1>
    %143 = arith.select %142, %127, %129 : vector<2x8xi1>, vector<2x8xf32>
    %c0_91 = arith.constant 0 : index
    %c0_92 = arith.constant 0 : index
    %144 = vector.load %arg6[%c0_91, %c0_92] : memref<8x32xbf16, #tpu.memory_space<vmem>>, vector<8x32xbf16>
    %145 = arith.truncf %143 : vector<2x8xf32> to vector<2x8xbf16>
    %cst_93 = arith.constant dense<0.000000e+00> : vector<2x32xf32>
    %146 = tpu.matmul %145, %144, %cst_93 {dimension_numbers = #tpu.dot_dimension_numbers<[1], [0], [0], [1], [0, 0, 1, 1], [], []>} : vector<2x8xbf16>, vector<8x32xbf16>, vector<2x32xf32> -> vector<2x32xf32>
    %147 = arith.addf %146, %6 : vector<2x32xf32>
    %c0_94 = arith.constant 0 : index
    %c1216 = arith.constant 1216 : index
    %148 = vector.load %arg10[%c0_94, %c1216] : memref<1x1352xf32, #tpu.memory_space<vmem>>, vector<1x32xf32>
    %149 = vector.broadcast %148 : vector<1x32xf32> to vector<2x32xf32>
    %150 = arith.addf %147, %149 : vector<2x32xf32>
    %cst_95 = arith.constant 0.000000e+00 : f32
    %151 = vector.broadcast %cst_95 : f32 to vector<2x32xf32>
    %152 = arith.maximumf %150, %151 : vector<2x32xf32>
    %c0_96 = arith.constant 0 : index
    %c96 = arith.constant 96 : index
    %153 = vector.load %arg5[%c0_96, %c96] : memref<32x264xbf16, #tpu.memory_space<vmem>>, vector<32x32xbf16>
    %154 = arith.truncf %152 : vector<2x32xf32> to vector<2x32xbf16>
    %cst_97 = arith.constant dense<0.000000e+00> : vector<2x32xf32>
    %155 = tpu.matmul %154, %153, %cst_97 {dimension_numbers = #tpu.dot_dimension_numbers<[1], [0], [0], [1], [0, 0, 1, 1], [], []>} : vector<2x32xbf16>, vector<32x32xbf16>, vector<2x32xf32> -> vector<2x32xf32>
    %c0_98 = arith.constant 0 : index
    %c1248 = arith.constant 1248 : index
    %156 = vector.load %arg10[%c0_98, %c1248] : memref<1x1352xf32, #tpu.memory_space<vmem>>, vector<1x32xf32>
    %157 = vector.broadcast %156 : vector<1x32xf32> to vector<2x32xf32>
    %158 = arith.addf %155, %157 : vector<2x32xf32>
    %c0_99 = arith.constant 0 : index
    %c128_100 = arith.constant 128 : index
    %159 = vector.load %arg5[%c0_99, %c128_100] : memref<32x264xbf16, #tpu.memory_space<vmem>>, vector<32x32xbf16>
    %160 = arith.truncf %158 : vector<2x32xf32> to vector<2x32xbf16>
    %cst_101 = arith.constant dense<0.000000e+00> : vector<2x32xf32>
    %161 = tpu.matmul %160, %159, %cst_101 {dimension_numbers = #tpu.dot_dimension_numbers<[1], [0], [0], [1], [0, 0, 1, 1], [], []>} : vector<2x32xbf16>, vector<32x32xbf16>, vector<2x32xf32> -> vector<2x32xf32>
    %162 = arith.addf %161, %7 : vector<2x32xf32>
    %c0_102 = arith.constant 0 : index
    %c1280 = arith.constant 1280 : index
    %163 = vector.load %arg10[%c0_102, %c1280] : memref<1x1352xf32, #tpu.memory_space<vmem>>, vector<1x32xf32>
    %164 = vector.broadcast %163 : vector<1x32xf32> to vector<2x32xf32>
    %165 = arith.addf %162, %164 : vector<2x32xf32>
    %cst_103 = arith.constant 0.000000e+00 : f32
    %166 = vector.broadcast %cst_103 : f32 to vector<2x32xf32>
    %167 = arith.maximumf %165, %166 : vector<2x32xf32>
    %c0_104 = arith.constant 0 : index
    %c160 = arith.constant 160 : index
    %168 = vector.load %arg5[%c0_104, %c160] : memref<32x264xbf16, #tpu.memory_space<vmem>>, vector<32x32xbf16>
    %169 = arith.truncf %167 : vector<2x32xf32> to vector<2x32xbf16>
    %cst_105 = arith.constant dense<0.000000e+00> : vector<2x32xf32>
    %170 = tpu.matmul %169, %168, %cst_105 {dimension_numbers = #tpu.dot_dimension_numbers<[1], [0], [0], [1], [0, 0, 1, 1], [], []>} : vector<2x32xbf16>, vector<32x32xbf16>, vector<2x32xf32> -> vector<2x32xf32>
    %c0_106 = arith.constant 0 : index
    %c1312 = arith.constant 1312 : index
    %171 = vector.load %arg10[%c0_106, %c1312] : memref<1x1352xf32, #tpu.memory_space<vmem>>, vector<1x32xf32>
    %172 = vector.broadcast %171 : vector<1x32xf32> to vector<2x32xf32>
    %173 = arith.addf %170, %172 : vector<2x32xf32>
    %c0_107 = arith.constant 0 : index
    %c192_108 = arith.constant 192 : index
    %174 = vector.load %arg5[%c0_107, %c192_108] : memref<32x264xbf16, #tpu.memory_space<vmem>>, vector<32x64xbf16>
    %175 = arith.truncf %173 : vector<2x32xf32> to vector<2x32xbf16>
    %cst_109 = arith.constant dense<0.000000e+00> : vector<2x64xf32>
    %176 = tpu.matmul %175, %174, %cst_109 {dimension_numbers = #tpu.dot_dimension_numbers<[1], [0], [0], [1], [0, 0, 1, 1], [], []>} : vector<2x32xbf16>, vector<32x64xbf16>, vector<2x64xf32> -> vector<2x64xf32>
    %c0_110 = arith.constant 0 : index
    %c1024 = arith.constant 1024 : index
    %177 = vector.load %arg10[%c0_110, %c1024] : memref<1x1352xf32, #tpu.memory_space<vmem>>, vector<1x64xf32>
    %178 = vector.broadcast %177 : vector<1x64xf32> to vector<2x64xf32>
    %179 = arith.addf %176, %178 : vector<2x64xf32>
    %cst_111 = arith.constant 0.000000e+00 : f32
    %180 = vector.broadcast %cst_111 : f32 to vector<2x64xf32>
    %181 = arith.maximumf %179, %180 : vector<2x64xf32>
    %c0_112 = arith.constant 0 : index
    %c0_113 = arith.constant 0 : index
    %182 = vector.load %arg9[%c0_112, %c0_113] : memref<64x1024xbf16, #tpu.memory_space<vmem>>, vector<64x1024xbf16>
    %183 = arith.truncf %181 : vector<2x64xf32> to vector<2x64xbf16>
    %cst_114 = arith.constant dense<0.000000e+00> : vector<2x1024xf32>
    %184 = tpu.matmul %183, %182, %cst_114 {dimension_numbers = #tpu.dot_dimension_numbers<[1], [0], [0], [1], [0, 0, 1, 1], [], []>} : vector<2x64xbf16>, vector<64x1024xbf16>, vector<2x1024xf32> -> vector<2x1024xf32>
    %c0_115 = arith.constant 0 : index
    %c0_116 = arith.constant 0 : index
    %185 = vector.load %arg10[%c0_115, %c0_116] : memref<1x1352xf32, #tpu.memory_space<vmem>>, vector<1x1024xf32>
    %186 = vector.broadcast %185 : vector<1x1024xf32> to vector<2x1024xf32>
    %187 = arith.addf %184, %186 : vector<2x1024xf32>
    %c0_117 = arith.constant 0 : index
    %c0_118 = arith.constant 0 : index
    %188 = vector.load %arg11[%c0_117, %c0_118] : memref<2x1024xf32, #tpu.memory_space<vmem>>, vector<2x1024xf32>
    tpu.vector_store %arg11[%c0_117, %c0_118], %187 {strides = array<i32>} : memref<2x1024xf32, #tpu.memory_space<vmem>>, vector<2x1024xf32>,
    return
  }
}

</mosaic_0001>

<llo_original>
// kernel: peppernet_cconv_vae_forward.1
$region0: #{peppernet_cconv_vae_forward.1}
  #allocation0 [shape = 'u32[]', space=smem, size = 0x4, offset = 0x4, fixed_abs, tag = 'smem constant byte address 0x4 - core index']
  #allocation1 [shape = 'u32[144,128]{1,0:T(1,128)}', space=vmem, size = 0x12000, scoped, tag = 'internal scratch']
  #allocation2 [shape = 'f32[2,32]{1,0:T(2,128)}', space=vmem, size = 0x400, scoped, tag = 'scratch operand']
  %s0 = inlined_call_operand.vmem [shape: bf16[2,36,64], index: 0, kind: input, shape index: {}]
  %s1 = inlined_call_operand.vmem [shape: f32[2,4], index: 1, kind: input, shape index: {}]
  %s2 = inlined_call_operand.vmem [shape: f32[2,8], index: 2, kind: input, shape index: {}]
  %s3 = inlined_call_operand.vmem [shape: bf16[8,36], index: 3, kind: input, shape index: {}]
  %s4 = inlined_call_operand.vmem [shape: f32[8,1], index: 4, kind: input, shape index: {}]
  %s5 = inlined_call_operand.vmem [shape: bf16[32,264], index: 5, kind: input, shape index: {}]
  %s6 = inlined_call_operand.vmem [shape: bf16[8,32], index: 6, kind: input, shape index: {}]
  %s7 = inlined_call_operand.vmem [shape: bf16[4,128], index: 7, kind: input, shape index: {}]
  %s8 = inlined_call_operand.vmem [shape: bf16[512,32], index: 8, kind: input, shape index: {}]
  %s9 = inlined_call_operand.vmem [shape: bf16[64,1024], index: 9, kind: input, shape index: {}]
  %s10 = inlined_call_operand.vmem [shape: f32[1,1352], index: 10, kind: input, shape index: {}]
  %s11 = inlined_call_operand.vmem [shape: f32[2,1024], index: 11, kind: output, shape index: {0}]
  %s12 = inlined_call_operand.hbm [shape: f32[2,8], index: 12, kind: output, shape index: {1}]
  %13 = xla_tuple %s11, %s12
  %s14 = sld [smem:[#allocation0]]
  $region62: #{peppernet_cconv_vae_forward.1} parent=0
    _
  %s16 = ssub.s32 1, %s14
  %s17 = scalar_select 0, %s16, %s14
  $region1: #{peppernet_cconv_vae_forward.1} parent=0
    #allocation3 [shape = 'u8[1024]{0}', space=vmem, size = 0x400, scoped, tag = 'output window, operand 1, single buffered']
    #allocation4 [shape = 's32[1]{0}', space=sflag, size = 0x4, scoped, tag = 'scoped memory for peppernet_cconv_vae_forward.1']
    %18 = vsyncpa [#allocation4], 0
    // Predicated region
    $region2: #{peppernet_cconv_vae_forward.1} parent=1 // pred_check
      _
    $region3: #{peppernet_cconv_vae_forward.1} parent=1 // pred_check_branch
      %20 = sbr.rel (0) target = $region5
    $region4: #{peppernet_cconv_vae_forward.1} parent=1 // pred_region
      _
    $region5: #{peppernet_cconv_vae_forward.1} parent=1 // pred_fallthru
      _
    // Predicated region
    $region6: #{peppernet_cconv_vae_forward.1} parent=1 // pred_check
      _
    $region7: #{peppernet_cconv_vae_forward.1} parent=1 // pred_check_branch
      %22 = sbr.rel (0) target = $region9
    $region8: #{peppernet_cconv_vae_forward.1} parent=1 // pred_region
      _
    $region9: #{peppernet_cconv_vae_forward.1} parent=1 // pred_fallthru
      _
    // Predicated region
    $region10: #{peppernet_cconv_vae_forward.1} parent=1 // pred_check
      _
    $region11: #{peppernet_cconv_vae_forward.1} parent=1 // pred_check_branch
      %24 = sbr.rel (0) target = $region13
    $region12: #{peppernet_cconv_vae_forward.1} parent=1 // pred_region
      _
    $region13: #{peppernet_cconv_vae_forward.1} parent=1 // pred_fallthru
      _
    // Predicated region
    $region14: #{peppernet_cconv_vae_forward.1} parent=1 // pred_check
      _
    $region15: #{peppernet_cconv_vae_forward.1} parent=1 // pred_check_branch
      %26 = sbr.rel (0) target = $region17
    $region16: #{peppernet_cconv_vae_forward.1} parent=1 // pred_region
      _
    $region17: #{peppernet_cconv_vae_forward.1} parent=1 // pred_fallthru
      _
    // Predicated region
    $region18: #{peppernet_cconv_vae_forward.1} parent=1 // pred_check
      _
    $region19: #{peppernet_cconv_vae_forward.1} parent=1 // pred_check_branch
      %28 = sbr.rel (0) target = $region21
    $region20: #{peppernet_cconv_vae_forward.1} parent=1 // pred_region
      _
    $region21: #{peppernet_cconv_vae_forward.1} parent=1 // pred_fallthru
      _
    // Predicated region
    $region22: #{peppernet_cconv_vae_forward.1} parent=1 // pred_check
      _
    $region23: #{peppernet_cconv_vae_forward.1} parent=1 // pred_check_branch
      %30 = sbr.rel (0) target = $region25
    $region24: #{peppernet_cconv_vae_forward.1} parent=1 // pred_region
      _
    $region25: #{peppernet_cconv_vae_forward.1} parent=1 // pred_fallthru
      _
    // Predicated region
    $region26: #{peppernet_cconv_vae_forward.1} parent=1 // pred_check
      _
    $region27: #{peppernet_cconv_vae_forward.1} parent=1 // pred_check_branch
      %32 = sbr.rel (0) target = $region29
    $region28: #{peppernet_cconv_vae_forward.1} parent=1 // pred_region
      _
    $region29: #{peppernet_cconv_vae_forward.1} parent=1 // pred_fallthru
      _
    // Predicated region
    $region30: #{peppernet_cconv_vae_forward.1} parent=1 // pred_check
      _
    $region31: #{peppernet_cconv_vae_forward.1} parent=1 // pred_check_branch
      %34 = sbr.rel (0) target = $region33
    $region32: #{peppernet_cconv_vae_forward.1} parent=1 // pred_region
      _
    $region33: #{peppernet_cconv_vae_forward.1} parent=1 // pred_fallthru
      _
    // Predicated region
    $region34: #{peppernet_cconv_vae_forward.1} parent=1 // pred_check
      _
    $region35: #{peppernet_cconv_vae_forward.1} parent=1 // pred_check_branch
      %36 = sbr.rel (0) target = $region37
    $region36: #{peppernet_cconv_vae_forward.1} parent=1 // pred_region
      _
    $region37: #{peppernet_cconv_vae_forward.1} parent=1 // pred_fallthru
      _
    // Predicated region
    $region38: #{peppernet_cconv_vae_forward.1} parent=1 // pred_check
      _
    $region39: #{peppernet_cconv_vae_forward.1} parent=1 // pred_check_branch
      %38 = sbr.rel (0) target = $region41
    $region40: #{peppernet_cconv_vae_forward.1} parent=1 // pred_region
      _
    $region41: #{peppernet_cconv_vae_forward.1} parent=1 // pred_fallthru
      _
    // Predicated region
    $region42: #{peppernet_cconv_vae_forward.1} parent=1 // pred_check
      _
    $region43: #{peppernet_cconv_vae_forward.1} parent=1 // pred_check_branch
      %40 = sbr.rel (0) target = $region45
    $region44: #{peppernet_cconv_vae_forward.1} parent=1 // pred_region
      _
    $region45: #{peppernet_cconv_vae_forward.1} parent=1 // pred_fallthru
      _
    %v42 = vld [vmem:[%s1] sm:$0x3]
    %v43 = vpack.c.bf16 %v42, %v42
    %v44 = vld [vmem:[%s7] sm:$0x3]
    %vm45 = vcmask 31744
    %v47 = vsel %vm45, %v43, 0
    %vm49 = vcmask 1041408
    %v51 = vsel %vm49, %v44, 0
    %53 = vmatprep.subr.bf16.mxu0 0
    %54 = vmatpush1.bf16.msra.mxu0 0
    %55 = vmatprep.subr.bf16.mxu0 0
    %56 = vmatpush1.bf16.msra.mxu0 0
    %57 = vmatprep.subr.bf16.mxu0 0
    %58 = vmatpush1.bf16.msra.mxu0 0
    %59 = vmatprep.subr.bf16.mxu0 0
    %60 = vmatpush1.bf16.msra.mxu0 0
    %61 = vmatprep.subr.bf16.mxu0 0
    %62 = vmatpush1.bf16.msra.mxu0 0
    %63 = vmatprep.subr.bf16.mxu0 0
    %64 = vmatpush1.bf16.msra.mxu0 0
    %65 = vmatprep.subr.bf16.mxu0 0
    %66 = vmatpush1.bf16.msra.mxu0 0
    %67 = vmatprep.subr.bf16.mxu0 0
    %68 = vmatpush1.bf16.msra.mxu0 %v51
    %69 = vmatprep.subr.bf16.mxu0 0
    %70 = vmatpush2.bf16.msra.mxu0 0
    %71 = vmatprep.subr.bf16.mxu0 0
    %72 = vmatpush2.bf16.msra.mxu0 0
    %73 = vmatprep.subr.bf16.mxu0 0
    %74 = vmatpush2.bf16.msra.mxu0 0
    %75 = vmatprep.subr.bf16.mxu0 0
    %76 = vmatpush2.bf16.msra.mxu0 0
    %77 = vmatprep.subr.bf16.mxu0 0
    %78 = vmatpush2.bf16.msra.mxu0 0
    %79 = vmatprep.subr.bf16.mxu0 0
    %80 = vmatpush2.bf16.msra.mxu0 0
    %81 = vmatprep.subr.bf16.mxu0 0
    %82 = vmatpush2.bf16.msra.mxu0 0
    %83 = vmatprep.subr.bf16.mxu0 0
    %84 = vmatpush2.bf16.msra.mxu0 0
    %85 = vmatprep.mubr.bf16.mxu0 0
    %86 = vmatmul.mubr.bf16.gmra.mxu0 %v47
    %v87 = vpop.f32.mrf.mxu0
    %v88 = vadd.f32 0.0, %v87
    %v89 = vpop.f32.mrf.mxu0
    %v90 = vpop.f32.mrf.mxu0
    %v91 = vpop.f32.mrf.mxu0
    %92 = vdwg.mxu0
    %v93 = vld [vmem:[%s3] sm:$0xf]
    %v94 = vld [vmem:[%s4] sm:$0xff]
    %v95 = vld [vmem:[%s0] sm:$0xf]
    %v96 = vld [vmem:[%s0 + $0x4] sm:$0xf]
    %v97 = vld [vmem:[%s0 + $0x8] sm:$0xf]
    %v98 = vld [vmem:[%s0 + $0xc] sm:$0xf]
    %v99 = vld [vmem:[%s0 + $0x10] sm:$0x3]
    %101 = vset.pattern.permute.xlu0 0
    %102 = vperm.xlu0 %101, %v94
    %v103 = vpop.permute.xlu0 %102
    %v110 = vunpack.c.l.b16 %v95
    %v111 = vunpack.c.l.b16 %v96
    %v112 = vunpack.c.l.b16 %v97
    %v113 = vunpack.c.l.b16 %v98
    %v114 = vunpack.c.l.b16 %v99
    %v115 = vpack.c.b16 %v111, %v110
    %v116 = vpack.c.b16 %v113, %v112
    %v117 = vpack.c.b16 %v114, %v114
    %vm120 = vcmask 293888
    %v122 = vsel %vm120, %v93, 0
    %v125 = vsel %vm49, %v117, 0
    %127 = vmatprep.subr.bf16.mxu0 0
    %128 = vmatpush1.bf16.msra.mxu0 0
    %129 = vmatprep.subr.bf16.mxu0 0
    %130 = vmatpush1.bf16.msra.mxu0 0
    %131 = vmatprep.subr.bf16.mxu0 0
    %132 = vmatpush1.bf16.msra.mxu0 0
    %133 = vmatprep.subr.bf16.mxu0 0
    %134 = vmatpush1.bf16.msra.mxu0 0
    %135 = vmatprep.subr.bf16.mxu0 0
    %136 = vmatpush1.bf16.msra.mxu0 0
    %137 = vmatprep.subr.bf16.mxu0 0
    %138 = vmatpush1.bf16.msra.mxu0 %v125
    %139 = vmatprep.subr.bf16.mxu0 0
    %140 = vmatpush1.bf16.msra.mxu0 %v116
    %141 = vmatprep.subr.bf16.mxu0 0
    %142 = vmatpush1.bf16.msra.mxu0 %v115
    %143 = vmatprep.subr.bf16.mxu0 0
    %144 = vmatpush2.bf16.msra.mxu0 0
    %145 = vmatprep.subr.bf16.mxu0 0
    %146 = vmatpush2.bf16.msra.mxu0 0
    %147 = vmatprep.subr.bf16.mxu0 0
    %148 = vmatpush2.bf16.msra.mxu0 0
    %149 = vmatprep.subr.bf16.mxu0 0
    %150 = vmatpush2.bf16.msra.mxu0 0
    %151 = vmatprep.subr.bf16.mxu0 0
    %152 = vmatpush2.bf16.msra.mxu0 0
    %153 = vmatprep.subr.bf16.mxu0 0
    %154 = vmatpush2.bf16.msra.mxu0 0
    %155 = vmatprep.subr.bf16.mxu0 0
    %156 = vmatpush2.bf16.msra.mxu0 0
    %157 = vmatprep.subr.bf16.mxu0 0
    %158 = vmatpush2.bf16.msra.mxu0 0
    %159 = vmatprep.mubr.bf16.mxu0 0
    %160 = vmatmul.mubr.bf16.gmra.mxu0 %v122
    %v161 = vpop.f32.mrf.mxu0
    %v162 = vadd.f32 %v103, %v161
    %v163 = vpop.f32.mrf.mxu0
    %v164 = vpop.f32.mrf.mxu0
    %v165 = vpop.f32.mrf.mxu0
    %166 = vdwg.mxu0
    %v167 = vmax.f32 %v162, 0.0
    %v168 = vpack.c.bf16 %v167, %v167
    %v169 = vld [vmem:[%s8] sm:$0xf]
    %v170 = vld [vmem:[%s8 + $0x4] sm:$0xf]
    %v171 = vld [vmem:[%s8 + $0x8] sm:$0xf]
    %v172 = vld [vmem:[%s8 + $0xc] sm:$0xf]
    %v173 = vld [vmem:[%s8 + $0x10] sm:$0xf]
    %v174 = vld [vmem:[%s8 + $0x14] sm:$0xf]
    %v175 = vld [vmem:[%s8 + $0x18] sm:$0xf]
    %v176 = vld [vmem:[%s8 + $0x1c] sm:$0xf]
    %v177 = vld [vmem:[%s8 + $0x20] sm:$0xf]
    %v178 = vld [vmem:[%s8 + $0x24] sm:$0xf]
    %v179 = vld [vmem:[%s8 + $0x28] sm:$0xf]
    %v180 = vld [vmem:[%s8 + $0x2c] sm:$0xf]
    %v181 = vld [vmem:[%s8 + $0x30] sm:$0xf]
    %v182 = vld [vmem:[%s8 + $0x34] sm:$0xf]
    %v183 = vld [vmem:[%s8 + $0x38] sm:$0xf]
    %v184 = vld [vmem:[%s8 + $0x3c] sm:$0xf]
    %v186 = vshrl.u32 %v168, 16
    %v196 = vunpack.c.l.b16 %v177
    %v197 = vunpack.c.l.b16 %v178
    %v198 = vunpack.c.l.b16 %v179
    %v199 = vunpack.c.l.b16 %v180
    %v200 = vunpack.c.l.b16 %v181
    %v201 = vunpack.c.l.b16 %v182
    %v202 = vunpack.c.l.b16 %v183
    %v203 = vunpack.c.l.b16 %v184
    %v204 = vpack.c.b16 %v197, %v196
    %v205 = vpack.c.b16 %v199, %v198
    %v206 = vpack.c.b16 %v201, %v200
    %v207 = vpack.c.b16 %v203, %v202
    %vm212 = vcmask 523264
    %v214 = vsel %vm212, %v186, 0
    %216 = vmatprep.subr.bf16.mxu0 0
    %217 = vmatpush1.bf16.msra.mxu0 0
    %218 = vmatprep.subr.bf16.mxu0 0
    %219 = vmatpush1.bf16.msra.mxu0 0
    %220 = vmatprep.subr.bf16.mxu0 0
    %221 = vmatpush1.bf16.msra.mxu0 0
    %222 = vmatprep.subr.bf16.mxu0 0
    %223 = vmatpush1.bf16.msra.mxu0 0
    %224 = vmatprep.subr.bf16.mxu0 0
    %225 = vmatpush1.bf16.msra.mxu0 %v207
    %226 = vmatprep.subr.bf16.mxu0 0
    %227 = vmatpush1.bf16.msra.mxu0 %v206
    %228 = vmatprep.subr.bf16.mxu0 0
    %229 = vmatpush1.bf16.msra.mxu0 %v205
    %230 = vmatprep.subr.bf16.mxu0 0
    %231 = vmatpush1.bf16.msra.mxu0 %v204
    %232 = vmatprep.subr.bf16.mxu0 0
    %233 = vmatpush2.bf16.msra.mxu0 0
    %234 = vmatprep.subr.bf16.mxu0 0
    %235 = vmatpush2.bf16.msra.mxu0 0
    %236 = vmatprep.subr.bf16.mxu0 0
    %237 = vmatpush2.bf16.msra.mxu0 0
    %238 = vmatprep.subr.bf16.mxu0 0
    %239 = vmatpush2.bf16.msra.mxu0 0
    %240 = vmatprep.subr.bf16.mxu0 0
    %241 = vmatpush2.bf16.msra.mxu0 0
    %242 = vmatprep.subr.bf16.mxu0 0
    %243 = vmatpush2.bf16.msra.mxu0 0
    %244 = vmatprep.subr.bf16.mxu0 0
    %245 = vmatpush2.bf16.msra.mxu0 0
    %246 = vmatprep.subr.bf16.mxu0 0
    %247 = vmatpush2.bf16.msra.mxu0 0
    %248 = vmatprep.mubr.bf16.mxu0 0
    %249 = vmatmul.mubr.bf16.gmra.mxu0 %v214
    %v250 = vpop.f32.mrf.mxu0
    %v251 = vadd.f32 0.0, %v250
    %v252 = vpop.f32.mrf.mxu0
    %v253 = vpop.f32.mrf.mxu0
    %v254 = vpop.f32.mrf.mxu0
    %255 = vdwg.mxu0
    %v264 = vunpack.c.l.b16 %v169
    %v265 = vunpack.c.l.b16 %v170
    %v266 = vunpack.c.l.b16 %v171
    %v267 = vunpack.c.l.b16 %v172
    %v268 = vunpack.c.l.b16 %v173
    %v269 = vunpack.c.l.b16 %v174
    %v270 = vunpack.c.l.b16 %v175
    %v271 = vunpack.c.l.b16 %v176
    %v272 = vpack.c.b16 %v265, %v264
    %v273 = vpack.c.b16 %v267, %v266
    %v274 = vpack.c.b16 %v269, %v268
    %v275 = vpack.c.b16 %v271, %v270
    %v280 = vsel %vm212, %v168, 0
    %282 = vmatprep.subr.bf16.mxu0 0
    %283 = vmatpush1.bf16.msra.mxu0 0
    %284 = vmatprep.subr.bf16.mxu0 0
    %285 = vmatpush1.bf16.msra.mxu0 0
    %286 = vmatprep.subr.bf16.mxu0 0
    %287 = vmatpush1.bf16.msra.mxu0 0
    %288 = vmatprep.subr.bf16.mxu0 0
    %289 = vmatpush1.bf16.msra.mxu0 0
    %290 = vmatprep.subr.bf16.mxu0 0
    %291 = vmatpush1.bf16.msra.mxu0 %v275
    %292 = vmatprep.subr.bf16.mxu0 0
    %293 = vmatpush1.bf16.msra.mxu0 %v274
    %294 = vmatprep.subr.bf16.mxu0 0
    %295 = vmatpush1.bf16.msra.mxu0 %v273
    %296 = vmatprep.subr.bf16.mxu0 0
    %297 = vmatpush1.bf16.msra.mxu0 %v272
    %298 = vmatprep.subr.bf16.mxu0 0
    %299 = vmatpush2.bf16.msra.mxu0 0
    %300 = vmatprep.subr.bf16.mxu0 0
    %301 = vmatpush2.bf16.msra.mxu0 0
    %302 = vmatprep.subr.bf16.mxu0 0
    %303 = vmatpush2.bf16.msra.mxu0 0
    %304 = vmatprep.subr.bf16.mxu0 0
    %305 = vmatpush2.bf16.msra.mxu0 0
    %306 = vmatprep.subr.bf16.mxu0 0
    %307 = vmatpush2.bf16.msra.mxu0 0
    %308 = vmatprep.subr.bf16.mxu0 0
    %309 = vmatpush2.bf16.msra.mxu0 0
    %310 = vmatprep.subr.bf16.mxu0 0
    %311 = vmatpush2.bf16.msra.mxu0 0
    %312 = vmatprep.subr.bf16.mxu0 0
    %313 = vmatpush2.bf16.msra.mxu0 0
    %314 = vmatprep.mubr.bf16.mxu0 0
    %315 = vmatmul.mubr.bf16.gmra.mxu0 %v280
    %v316 = vpop.f32.mrf.mxu0
    %v317 = vadd.f32 %v251, %v316
    %v318 = vpop.f32.mrf.mxu0
    %v319 = vpop.f32.mrf.mxu0
    %v320 = vpop.f32.mrf.mxu0
    %321 = vdwg.mxu0
    %v322 = vld [vmem:[%s8 + $0x40] sm:$0xf]
    %v323 = vld [vmem:[%s8 + $0x44] sm:$0xf]
    %v324 = vld [vmem:[%s8 + $0x48] sm:$0xf]
    %v325 = vld [vmem:[%s8 + $0x4c] sm:$0xf]
    %v326 = vld [vmem:[%s8 + $0x50] sm:$0xf]
    %v327 = vld [vmem:[%s8 + $0x54] sm:$0xf]
    %v328 = vld [vmem:[%s8 + $0x58] sm:$0xf]
    %v329 = vld [vmem:[%s8 + $0x5c] sm:$0xf]
    %v331 = vrot.slane %v168, 1
    %v340 = vunpack.c.l.b16 %v322
    %v341 = vunpack.c.l.b16 %v323
    %v342 = vunpack.c.l.b16 %v324
    %v343 = vunpack.c.l.b16 %v325
    %v344 = vunpack.c.l.b16 %v326
    %v345 = vunpack.c.l.b16 %v327
    %v346 = vunpack.c.l.b16 %v328
    %v347 = vunpack.c.l.b16 %v329
    %v348 = vpack.c.b16 %v341, %v340
    %v349 = vpack.c.b16 %v343, %v342
    %v350 = vpack.c.b16 %v345, %v344
    %v351 = vpack.c.b16 %v347, %v346
    %v357 = vsel %vm212, %v331, 0
    %359 = vmatprep.subr.bf16.mxu0 0
    %360 = vmatpush1.bf16.msra.mxu0 0
    %361 = vmatprep.subr.bf16.mxu0 0
    %362 = vmatpush1.bf16.msra.mxu0 0
    %363 = vmatprep.subr.bf16.mxu0 0
    %364 = vmatpush1.bf16.msra.mxu0 0
    %365 = vmatprep.subr.bf16.mxu0 0
    %366 = vmatpush1.bf16.msra.mxu0 0
    %367 = vmatprep.subr.bf16.mxu0 0
    %368 = vmatpush1.bf16.msra.mxu0 %v351
    %369 = vmatprep.subr.bf16.mxu0 0
    %370 = vmatpush1.bf16.msra.mxu0 %v350
    %371 = vmatprep.subr.bf16.mxu0 0
    %372 = vmatpush1.bf16.msra.mxu0 %v349
    %373 = vmatprep.subr.bf16.mxu0 0
    %374 = vmatpush1.bf16.msra.mxu0 %v348
    %375 = vmatprep.subr.bf16.mxu0 0
    %376 = vmatpush2.bf16.msra.mxu0 0
    %377 = vmatprep.subr.bf16.mxu0 0
    %378 = vmatpush2.bf16.msra.mxu0 0
    %379 = vmatprep.subr.bf16.mxu0 0
    %380 = vmatpush2.bf16.msra.mxu0 0
    %381 = vmatprep.subr.bf16.mxu0 0
    %382 = vmatpush2.bf16.msra.mxu0 0
    %383 = vmatprep.subr.bf16.mxu0 0
    %384 = vmatpush2.bf16.msra.mxu0 0
    %385 = vmatprep.subr.bf16.mxu0 0
    %386 = vmatpush2.bf16.msra.mxu0 0
    %387 = vmatprep.subr.bf16.mxu0 0
    %388 = vmatpush2.bf16.msra.mxu0 0
    %389 = vmatprep.subr.bf16.mxu0 0
    %390 = vmatpush2.bf16.msra.mxu0 0
    %391 = vmatprep.mubr.bf16.mxu0 0
    %392 = vmatmul.mubr.bf16.gmra.mxu0 %v357
    %v393 = vpop.f32.mrf.mxu0
    %v394 = vadd.f32 0.0, %v393
    %v395 = vpop.f32.mrf.mxu0
    %v396 = vpop.f32.mrf.mxu0
    %v397 = vpop.f32.mrf.mxu0
    %398 = vdwg.mxu0
    %v399 = vadd.f32 %v317, %v394
    %v400 = vld [vmem:[%s8 + $0x60] sm:$0xf]
    %v401 = vld [vmem:[%s8 + $0x64] sm:$0xf]
    %v402 = vld [vmem:[%s8 + $0x68] sm:$0xf]
    %v403 = vld [vmem:[%s8 + $0x6c] sm:$0xf]
    %v404 = vld [vmem:[%s8 + $0x70] sm:$0xf]
    %v405 = vld [vmem:[%s8 + $0x74] sm:$0xf]
    %v406 = vld [vmem:[%s8 + $0x78] sm:$0xf]
    %v407 = vld [vmem:[%s8 + $0x7c] sm:$0xf]
    %v408 = vrot.slane %v186, 1
    %v417 = vunpack.c.l.b16 %v400
    %v418 = vunpack.c.l.b16 %v401
    %v419 = vunpack.c.l.b16 %v402
    %v420 = vunpack.c.l.b16 %v403
    %v421 = vunpack.c.l.b16 %v404
    %v422 = vunpack.c.l.b16 %v405
    %v423 = vunpack.c.l.b16 %v406
    %v424 = vunpack.c.l.b16 %v407
    %v425 = vpack.c.b16 %v418, %v417
    %v426 = vpack.c.b16 %v420, %v419
    %v427 = vpack.c.b16 %v422, %v421
    %v428 = vpack.c.b16 %v424, %v423
    %v434 = vsel %vm212, %v408, 0
    %436 = vmatprep.subr.bf16.mxu0 0
    %437 = vmatpush1.bf16.msra.mxu0 0
    %438 = vmatprep.subr.bf16.mxu0 0
    %439 = vmatpush1.bf16.msra.mxu0 0
    %440 = vmatprep.subr.bf16.mxu0 0
    %441 = vmatpush1.bf16.msra.mxu0 0
    %442 = vmatprep.subr.bf16.mxu0 0
    %443 = vmatpush1.bf16.msra.mxu0 0
    %444 = vmatprep.subr.bf16.mxu0 0
    %445 = vmatpush1.bf16.msra.mxu0 %v428
    %446 = vmatprep.subr.bf16.mxu0 0
    %447 = vmatpush1.bf16.msra.mxu0 %v427
    %448 = vmatprep.subr.bf16.mxu0 0
    %449 = vmatpush1.bf16.msra.mxu0 %v426
    %450 = vmatprep.subr.bf16.mxu0 0
    %451 = vmatpush1.bf16.msra.mxu0 %v425
    %452 = vmatprep.subr.bf16.mxu0 0
    %453 = vmatpush2.bf16.msra.mxu0 0
    %454 = vmatprep.subr.bf16.mxu0 0
    %455 = vmatpush2.bf16.msra.mxu0 0
    %456 = vmatprep.subr.bf16.mxu0 0
    %457 = vmatpush2.bf16.msra.mxu0 0
    %458 = vmatprep.subr.bf16.mxu0 0
    %459 = vmatpush2.bf16.msra.mxu0 0
    %460 = vmatprep.subr.bf16.mxu0 0
    %461 = vmatpush2.bf16.msra.mxu0 0
    %462 = vmatprep.subr.bf16.mxu0 0
    %463 = vmatpush2.bf16.msra.mxu0 0
    %464 = vmatprep.subr.bf16.mxu0 0
    %465 = vmatpush2.bf16.msra.mxu0 0
    %466 = vmatprep.subr.bf16.mxu0 0
    %467 = vmatpush2.bf16.msra.mxu0 0
    %468 = vmatprep.mubr.bf16.mxu0 0
    %469 = vmatmul.mubr.bf16.gmra.mxu0 %v434
    %v470 = vpop.f32.mrf.mxu0
    %v471 = vadd.f32 0.0, %v470
    %v472 = vpop.f32.mrf.mxu0
    %v473 = vpop.f32.mrf.mxu0
    %v474 = vpop.f32.mrf.mxu0
    %475 = vdwg.mxu0
    %v476 = vadd.f32 %v399, %v471
    %v477 = vld [vmem:[%s8 + $0x80] sm:$0xf]
    %v478 = vld [vmem:[%s8 + $0x84] sm:$0xf]
    %v479 = vld [vmem:[%s8 + $0x88] sm:$0xf]
    %v480 = vld [vmem:[%s8 + $0x8c] sm:$0xf]
    %v481 = vld [vmem:[%s8 + $0x90] sm:$0xf]
    %v482 = vld [vmem:[%s8 + $0x94] sm:$0xf]
    %v483 = vld [vmem:[%s8 + $0x98] sm:$0xf]
    %v484 = vld [vmem:[%s8 + $0x9c] sm:$0xf]
    %v485 = vrot.slane %v168, 2
    %v494 = vunpack.c.l.b16 %v477
    %v495 = vunpack.c.l.b16 %v478
    %v496 = vunpack.c.l.b16 %v479
    %v497 = vunpack.c.l.b16 %v480
    %v498 = vunpack.c.l.b16 %v481
    %v499 = vunpack.c.l.b16 %v482
    %v500 = vunpack.c.l.b16 %v483
    %v501 = vunpack.c.l.b16 %v484
    %v502 = vpack.c.b16 %v495, %v494
    %v503 = vpack.c.b16 %v497, %v496
    %v504 = vpack.c.b16 %v499, %v498
    %v505 = vpack.c.b16 %v501, %v500
    %v511 = vsel %vm212, %v485, 0
    %513 = vmatprep.subr.bf16.mxu0 0
    %514 = vmatpush1.bf16.msra.mxu0 0
    %515 = vmatprep.subr.bf16.mxu0 0
    %516 = vmatpush1.bf16.msra.mxu0 0
    %517 = vmatprep.subr.bf16.mxu0 0
    %518 = vmatpush1.bf16.msra.mxu0 0
    %519 = vmatprep.subr.bf16.mxu0 0
    %520 = vmatpush1.bf16.msra.mxu0 0
    %521 = vmatprep.subr.bf16.mxu0 0
    %522 = vmatpush1.bf16.msra.mxu0 %v505
    %523 = vmatprep.subr.bf16.mxu0 0
    %524 = vmatpush1.bf16.msra.mxu0 %v504
    %525 = vmatprep.subr.bf16.mxu0 0
    %526 = vmatpush1.bf16.msra.mxu0 %v503
    %527 = vmatprep.subr.bf16.mxu0 0
    %528 = vmatpush1.bf16.msra.mxu0 %v502
    %529 = vmatprep.subr.bf16.mxu0 0
    %530 = vmatpush2.bf16.msra.mxu0 0
    %531 = vmatprep.subr.bf16.mxu0 0
    %532 = vmatpush2.bf16.msra.mxu0 0
    %533 = vmatprep.subr.bf16.mxu0 0
    %534 = vmatpush2.bf16.msra.mxu0 0
    %535 = vmatprep.subr.bf16.mxu0 0
    %536 = vmatpush2.bf16.msra.mxu0 0
    %537 = vmatprep.subr.bf16.mxu0 0
    %538 = vmatpush2.bf16.msra.mxu0 0
    %539 = vmatprep.subr.bf16.mxu0 0
    %540 = vmatpush2.bf16.msra.mxu0 0
    %541 = vmatprep.subr.bf16.mxu0 0
    %542 = vmatpush2.bf16.msra.mxu0 0
    %543 = vmatprep.subr.bf16.mxu0 0
    %544 = vmatpush2.bf16.msra.mxu0 0
    %545 = vmatprep.mubr.bf16.mxu0 0
    %546 = vmatmul.mubr.bf16.gmra.mxu0 %v511
    %v547 = vpop.f32.mrf.mxu0
    %v548 = vadd.f32 0.0, %v547
    %v549 = vpop.f32.mrf.mxu0
    %v550 = vpop.f32.mrf.mxu0
    %v551 = vpop.f32.mrf.mxu0
    %552 = vdwg.mxu0
    %v553 = vadd.f32 %v476, %v548
    %v554 = vld [vmem:[%s8 + $0xa0] sm:$0xf]
    %v555 = vld [vmem:[%s8 + $0xa4] sm:$0xf]
    %v556 = vld [vmem:[%s8 + $0xa8] sm:$0xf]
    %v557 = vld [vmem:[%s8 + $0xac] sm:$0xf]
    %v558 = vld [vmem:[%s8 + $0xb0] sm:$0xf]
    %v559 = vld [vmem:[%s8 + $0xb4] sm:$0xf]
    %v560 = vld [vmem:[%s8 + $0xb8] sm:$0xf]
    %v561 = vld [vmem:[%s8 + $0xbc] sm:$0xf]
    %v562 = vrot.slane %v186, 2
    %v571 = vunpack.c.l.b16 %v554
    %v572 = vunpack.c.l.b16 %v555
    %v573 = vunpack.c.l.b16 %v556
    %v574 = vunpack.c.l.b16 %v557
    %v575 = vunpack.c.l.b16 %v558
    %v576 = vunpack.c.l.b16 %v559
    %v577 = vunpack.c.l.b16 %v560
    %v578 = vunpack.c.l.b16 %v561
    %v579 = vpack.c.b16 %v572, %v571
    %v580 = vpack.c.b16 %v574, %v573
    %v581 = vpack.c.b16 %v576, %v575
    %v582 = vpack.c.b16 %v578, %v577
    %v588 = vsel %vm212, %v562, 0
    %590 = vmatprep.subr.bf16.mxu0 0
    %591 = vmatpush1.bf16.msra.mxu0 0
    %592 = vmatprep.subr.bf16.mxu0 0
    %593 = vmatpush1.bf16.msra.mxu0 0
    %594 = vmatprep.subr.bf16.mxu0 0
    %595 = vmatpush1.bf16.msra.mxu0 0
    %596 = vmatprep.subr.bf16.mxu0 0
    %597 = vmatpush1.bf16.msra.mxu0 0
    %598 = vmatprep.subr.bf16.mxu0 0
    %599 = vmatpush1.bf16.msra.mxu0 %v582
    %600 = vmatprep.subr.bf16.mxu0 0
    %601 = vmatpush1.bf16.msra.mxu0 %v581
    %602 = vmatprep.subr.bf16.mxu0 0
    %603 = vmatpush1.bf16.msra.mxu0 %v580
    %604 = vmatprep.subr.bf16.mxu0 0
    %605 = vmatpush1.bf16.msra.mxu0 %v579
    %606 = vmatprep.subr.bf16.mxu0 0
    %607 = vmatpush2.bf16.msra.mxu0 0
    %608 = vmatprep.subr.bf16.mxu0 0
    %609 = vmatpush2.bf16.msra.mxu0 0
    %610 = vmatprep.subr.bf16.mxu0 0
    %611 = vmatpush2.bf16.msra.mxu0 0
    %612 = vmatprep.subr.bf16.mxu0 0
    %613 = vmatpush2.bf16.msra.mxu0 0
    %614 = vmatprep.subr.bf16.mxu0 0
    %615 = vmatpush2.bf16.msra.mxu0 0
    %616 = vmatprep.subr.bf16.mxu0 0
    %617 = vmatpush2.bf16.msra.mxu0 0
    %618 = vmatprep.subr.bf16.mxu0 0
    %619 = vmatpush2.bf16.msra.mxu0 0
    %620 = vmatprep.subr.bf16.mxu0 0
    %621 = vmatpush2.bf16.msra.mxu0 0
    %622 = vmatprep.mubr.bf16.mxu0 0
    %623 = vmatmul.mubr.bf16.gmra.mxu0 %v588
    %v624 = vpop.f32.mrf.mxu0
    %v625 = vadd.f32 0.0, %v624
    %v626 = vpop.f32.mrf.mxu0
    %v627 = vpop.f32.mrf.mxu0
    %v628 = vpop.f32.mrf.mxu0
    %629 = vdwg.mxu0
    %v630 = vadd.f32 %v553, %v625
    %v631 = vld [vmem:[%s8 + $0xc0] sm:$0xf]
    %v632 = vld [vmem:[%s8 + $0xc4] sm:$0xf]
    %v633 = vld [vmem:[%s8 + $0xc8] sm:$0xf]
    %v634 = vld [vmem:[%s8 + $0xcc] sm:$0xf]
    %v635 = vld [vmem:[%s8 + $0xd0] sm:$0xf]
    %v636 = vld [vmem:[%s8 + $0xd4] sm:$0xf]
    %v637 = vld [vmem:[%s8 + $0xd8] sm:$0xf]
    %v638 = vld [vmem:[%s8 + $0xdc] sm:$0xf]
    %v639 = vrot.slane %v168, 3
    %v648 = vunpack.c.l.b16 %v631
    %v649 = vunpack.c.l.b16 %v632
    %v650 = vunpack.c.l.b16 %v633
    %v651 = vunpack.c.l.b16 %v634
    %v652 = vunpack.c.l.b16 %v635
    %v653 = vunpack.c.l.b16 %v636
    %v654 = vunpack.c.l.b16 %v637
    %v655 = vunpack.c.l.b16 %v638
    %v656 = vpack.c.b16 %v649, %v648
    %v657 = vpack.c.b16 %v651, %v650
    %v658 = vpack.c.b16 %v653, %v652
    %v659 = vpack.c.b16 %v655, %v654
    %v665 = vsel %vm212, %v639, 0
    %667 = vmatprep.subr.bf16.mxu0 0
    %668 = vmatpush1.bf16.msra.mxu0 0
    %669 = vmatprep.subr.bf16.mxu0 0
    %670 = vmatpush1.bf16.msra.mxu0 0
    %671 = vmatprep.subr.bf16.mxu0 0
    %672 = vmatpush1.bf16.msra.mxu0 0
    %673 = vmatprep.subr.bf16.mxu0 0
    %674 = vmatpush1.bf16.msra.mxu0 0
    %675 = vmatprep.subr.bf16.mxu0 0
    %676 = vmatpush1.bf16.msra.mxu0 %v659
    %677 = vmatprep.subr.bf16.mxu0 0
    %678 = vmatpush1.bf16.msra.mxu0 %v658
    %679 = vmatprep.subr.bf16.mxu0 0
    %680 = vmatpush1.bf16.msra.mxu0 %v657
    %681 = vmatprep.subr.bf16.mxu0 0
    %682 = vmatpush1.bf16.msra.mxu0 %v656
    %683 = vmatprep.subr.bf16.mxu0 0
    %684 = vmatpush2.bf16.msra.mxu0 0
    %685 = vmatprep.subr.bf16.mxu0 0
    %686 = vmatpush2.bf16.msra.mxu0 0
    %687 = vmatprep.subr.bf16.mxu0 0
    %688 = vmatpush2.bf16.msra.mxu0 0
    %689 = vmatprep.subr.bf16.mxu0 0
    %690 = vmatpush2.bf16.msra.mxu0 0
    %691 = vmatprep.subr.bf16.mxu0 0
    %692 = vmatpush2.bf16.msra.mxu0 0
    %693 = vmatprep.subr.bf16.mxu0 0
    %694 = vmatpush2.bf16.msra.mxu0 0
    %695 = vmatprep.subr.bf16.mxu0 0
    %696 = vmatpush2.bf16.msra.mxu0 0
    %697 = vmatprep.subr.bf16.mxu0 0
    %698 = vmatpush2.bf16.msra.mxu0 0
    %699 = vmatprep.mubr.bf16.mxu0 0
    %700 = vmatmul.mubr.bf16.gmra.mxu0 %v665
    %v701 = vpop.f32.mrf.mxu0
    %v702 = vadd.f32 0.0, %v701
    %v703 = vpop.f32.mrf.mxu0
    %v704 = vpop.f32.mrf.mxu0
    %v705 = vpop.f32.mrf.mxu0
    %706 = vdwg.mxu0
    %v707 = vadd.f32 %v630, %v702
    %v708 = vld [vmem:[%s8 + $0xe0] sm:$0xf]
    %v709 = vld [vmem:[%s8 + $0xe4] sm:$0xf]
    %v710 = vld [vmem:[%s8 + $0xe8] sm:$0xf]
    %v711 = vld [vmem:[%s8 + $0xec] sm:$0xf]
    %v712 = vld [vmem:[%s8 + $0xf0] sm:$0xf]
    %v713 = vld [vmem:[%s8 + $0xf4] sm:$0xf]
    %v714 = vld [vmem:[%s8 + $0xf8] sm:$0xf]
    %v715 = vld [vmem:[%s8 + $0xfc] sm:$0xf]
    %v716 = vrot.slane %v186, 3
    %v725 = vunpack.c.l.b16 %v708
    %v726 = vunpack.c.l.b16 %v709
    %v727 = vunpack.c.l.b16 %v710
    %v728 = vunpack.c.l.b16 %v711
    %v729 = vunpack.c.l.b16 %v712
    %v730 = vunpack.c.l.b16 %v713
    %v731 = vunpack.c.l.b16 %v714
    %v732 = vunpack.c.l.b16 %v715
    %v733 = vpack.c.b16 %v726, %v725
    %v734 = vpack.c.b16 %v728, %v727
    %v735 = vpack.c.b16 %v730, %v729
    %v736 = vpack.c.b16 %v732, %v731
    %v742 = vsel %vm212, %v716, 0
    %744 = vmatprep.subr.bf16.mxu0 0
    %745 = vmatpush1.bf16.msra.mxu0 0
    %746 = vmatprep.subr.bf16.mxu0 0
    %747 = vmatpush1.bf16.msra.mxu0 0
    %748 = vmatprep.subr.bf16.mxu0 0
    %749 = vmatpush1.bf16.msra.mxu0 0
    %750 = vmatprep.subr.bf16.mxu0 0
    %751 = vmatpush1.bf16.msra.mxu0 0
    %752 = vmatprep.subr.bf16.mxu0 0
    %753 = vmatpush1.bf16.msra.mxu0 %v736
    %754 = vmatprep.subr.bf16.mxu0 0
    %755 = vmatpush1.bf16.msra.mxu0 %v735
    %756 = vmatprep.subr.bf16.mxu0 0
    %757 = vmatpush1.bf16.msra.mxu0 %v734
    %758 = vmatprep.subr.bf16.mxu0 0
    %759 = vmatpush1.bf16.msra.mxu0 %v733
    %760 = vmatprep.subr.bf16.mxu0 0
    %761 = vmatpush2.bf16.msra.mxu0 0
    %762 = vmatprep.subr.bf16.mxu0 0
    %763 = vmatpush2.bf16.msra.mxu0 0
    %764 = vmatprep.subr.bf16.mxu0 0
    %765 = vmatpush2.bf16.msra.mxu0 0
    %766 = vmatprep.subr.bf16.mxu0 0
    %767 = vmatpush2.bf16.msra.mxu0 0
    %768 = vmatprep.subr.bf16.mxu0 0
    %769 = vmatpush2.bf16.msra.mxu0 0
    %770 = vmatprep.subr.bf16.mxu0 0
    %771 = vmatpush2.bf16.msra.mxu0 0
    %772 = vmatprep.subr.bf16.mxu0 0
    %773 = vmatpush2.bf16.msra.mxu0 0
    %774 = vmatprep.subr.bf16.mxu0 0
    %775 = vmatpush2.bf16.msra.mxu0 0
    %776 = vmatprep.mubr.bf16.mxu0 0
    %777 = vmatmul.mubr.bf16.gmra.mxu0 %v742
    %v778 = vpop.f32.mrf.mxu0
    %v779 = vadd.f32 0.0, %v778
    %v780 = vpop.f32.mrf.mxu0
    %v781 = vpop.f32.mrf.mxu0
    %v782 = vpop.f32.mrf.mxu0
    %783 = vdwg.mxu0
    %v784 = vadd.f32 %v707, %v779
    %vm785 = vcmask 253952
    %786 = vst.msk [vmem:[#allocation2] sm:$0x1] %vm785, %v784
    %s787 = scalar_lea.vmem %s0, 20
    %v788 = vld [vmem:[%s787] sm:$0xf]
    %v789 = vld [vmem:[%s787 + $0x4] sm:$0xf]
    %v790 = vld [vmem:[%s787 + $0x8] sm:$0xf]
    %v791 = vld [vmem:[%s787 + $0xc] sm:$0xf]
    %v792 = vld [vmem:[%s787 + $0x10] sm:$0x3]
    %v798 = vunpack.c.l.b16 %v788
    %v799 = vunpack.c.l.b16 %v789
    %v800 = vunpack.c.l.b16 %v790
    %v801 = vunpack.c.l.b16 %v791
    %v802 = vunpack.c.l.b16 %v792
    %v803 = vpack.c.b16 %v799, %v798
    %v804 = vpack.c.b16 %v801, %v800
    %v805 = vpack.c.b16 %v802, %v802
    %v809 = vsel %vm49, %v805, 0
    %811 = vmatprep.subr.bf16.mxu0 0
    %812 = vmatpush1.bf16.msra.mxu0 0
    %813 = vmatprep.subr.bf16.mxu0 0
    %814 = vmatpush1.bf16.msra.mxu0 0
    %815 = vmatprep.subr.bf16.mxu0 0
    %816 = vmatpush1.bf16.msra.mxu0 0
    %817 = vmatprep.subr.bf16.mxu0 0
    %818 = vmatpush1.bf16.msra.mxu0 0
    %819 = vmatprep.subr.bf16.mxu0 0
    %820 = vmatpush1.bf16.msra.mxu0 0
    %821 = vmatprep.subr.bf16.mxu0 0
    %822 = vmatpush1.bf16.msra.mxu0 %v809
    %823 = vmatprep.subr.bf16.mxu0 0
    %824 = vmatpush1.bf16.msra.mxu0 %v804
    %825 = vmatprep.subr.bf16.mxu0 0
    %826 = vmatpush1.bf16.msra.mxu0 %v803
    %827 = vmatprep.subr.bf16.mxu0 0
    %828 = vmatpush2.bf16.msra.mxu0 0
    %829 = vmatprep.subr.bf16.mxu0 0
    %830 = vmatpush2.bf16.msra.mxu0 0
    %831 = vmatprep.subr.bf16.mxu0 0
    %832 = vmatpush2.bf16.msra.mxu0 0
    %833 = vmatprep.subr.bf16.mxu0 0
    %834 = vmatpush2.bf16.msra.mxu0 0
    %835 = vmatprep.subr.bf16.mxu0 0
    %836 = vmatpush2.bf16.msra.mxu0 0
    %837 = vmatprep.subr.bf16.mxu0 0
    %838 = vmatpush2.bf16.msra.mxu0 0
    %839 = vmatprep.subr.bf16.mxu0 0
    %840 = vmatpush2.bf16.msra.mxu0 0
    %841 = vmatprep.subr.bf16.mxu0 0
    %842 = vmatpush2.bf16.msra.mxu0 0
    %843 = vmatprep.mubr.bf16.mxu0 0
    %844 = vmatmul.mubr.bf16.gmra.mxu0 %v122
    %v845 = vpop.f32.mrf.mxu0
    %v846 = vadd.f32 %v103, %v845
    %v847 = vpop.f32.mrf.mxu0
    %v848 = vpop.f32.mrf.mxu0
    %v849 = vpop.f32.mrf.mxu0
    %850 = vdwg.mxu0
    %v851 = vmax.f32 %v846, 0.0
    %v852 = vpack.c.bf16 %v851, %v851
    %v853 = vld [vmem:[%s8] sm:$0xf]
    %v854 = vld [vmem:[%s8 + $0x4] sm:$0xf]
    %v855 = vld [vmem:[%s8 + $0x8] sm:$0xf]
    %v856 = vld [vmem:[%s8 + $0xc] sm:$0xf]
    %v857 = vld [vmem:[%s8 + $0x10] sm:$0xf]
    %v858 = vld [vmem:[%s8 + $0x14] sm:$0xf]
    %v859 = vld [vmem:[%s8 + $0x18] sm:$0xf]
    %v860 = vld [vmem:[%s8 + $0x1c] sm:$0xf]
    %v861 = vld [vmem:[%s8 + $0x20] sm:$0xf]
    %v862 = vld [vmem:[%s8 + $0x24] sm:$0xf]
    %v863 = vld [vmem:[%s8 + $0x28] sm:$0xf]
    %v864 = vld [vmem:[%s8 + $0x2c] sm:$0xf]
    %v865 = vld [vmem:[%s8 + $0x30] sm:$0xf]
    %v866 = vld [vmem:[%s8 + $0x34] sm:$0xf]
    %v867 = vld [vmem:[%s8 + $0x38] sm:$0xf]
    %v868 = vld [vmem:[%s8 + $0x3c] sm:$0xf]
    %v870 = vshrl.u32 %v852, 16
    %v880 = vunpack.c.l.b16 %v861
    %v881 = vunpack.c.l.b16 %v862
    %v882 = vunpack.c.l.b16 %v863
    %v883 = vunpack.c.l.b16 %v864
    %v884 = vunpack.c.l.b16 %v865
    %v885 = vunpack.c.l.b16 %v866
    %v886 = vunpack.c.l.b16 %v867
    %v887 = vunpack.c.l.b16 %v868
    %v888 = vpack.c.b16 %v881, %v880
    %v889 = vpack.c.b16 %v883, %v882
    %v890 = vpack.c.b16 %v885, %v884
    %v891 = vpack.c.b16 %v887, %v886
    %v897 = vsel %vm212, %v870, 0
    %899 = vmatprep.subr.bf16.mxu0 0
    %900 = vmatpush1.bf16.msra.mxu0 0
    %901 = vmatprep.subr.bf16.mxu0 0
    %902 = vmatpush1.bf16.msra.mxu0 0
    %903 = vmatprep.subr.bf16.mxu0 0
    %904 = vmatpush1.bf16.msra.mxu0 0
    %905 = vmatprep.subr.bf16.mxu0 0
    %906 = vmatpush1.bf16.msra.mxu0 0
    %907 = vmatprep.subr.bf16.mxu0 0
    %908 = vmatpush1.bf16.msra.mxu0 %v891
    %909 = vmatprep.subr.bf16.mxu0 0
    %910 = vmatpush1.bf16.msra.mxu0 %v890
    %911 = vmatprep.subr.bf16.mxu0 0
    %912 = vmatpush1.bf16.msra.mxu0 %v889
    %913 = vmatprep.subr.bf16.mxu0 0
    %914 = vmatpush1.bf16.msra.mxu0 %v888
    %915 = vmatprep.subr.bf16.mxu0 0
    %916 = vmatpush2.bf16.msra.mxu0 0
    %917 = vmatprep.subr.bf16.mxu0 0
    %918 = vmatpush2.bf16.msra.mxu0 0
    %919 = vmatprep.subr.bf16.mxu0 0
    %920 = vmatpush2.bf16.msra.mxu0 0
    %921 = vmatprep.subr.bf16.mxu0 0
    %922 = vmatpush2.bf16.msra.mxu0 0
    %923 = vmatprep.subr.bf16.mxu0 0
    %924 = vmatpush2.bf16.msra.mxu0 0
    %925 = vmatprep.subr.bf16.mxu0 0
    %926 = vmatpush2.bf16.msra.mxu0 0
    %927 = vmatprep.subr.bf16.mxu0 0
    %928 = vmatpush2.bf16.msra.mxu0 0
    %929 = vmatprep.subr.bf16.mxu0 0
    %930 = vmatpush2.bf16.msra.mxu0 0
    %931 = vmatprep.mubr.bf16.mxu0 0
    %932 = vmatmul.mubr.bf16.gmra.mxu0 %v897
    %v933 = vpop.f32.mrf.mxu0
    %v934 = vadd.f32 0.0, %v933
    %v935 = vpop.f32.mrf.mxu0
    %v936 = vpop.f32.mrf.mxu0
    %v937 = vpop.f32.mrf.mxu0
    %938 = vdwg.mxu0
    %v947 = vunpack.c.l.b16 %v853
    %v948 = vunpack.c.l.b16 %v854
    %v949 = vunpack.c.l.b16 %v855
    %v950 = vunpack.c.l.b16 %v856
    %v951 = vunpack.c.l.b16 %v857
    %v952 = vunpack.c.l.b16 %v858
    %v953 = vunpack.c.l.b16 %v859
    %v954 = vunpack.c.l.b16 %v860
    %v955 = vpack.c.b16 %v948, %v947
    %v956 = vpack.c.b16 %v950, %v949
    %v957 = vpack.c.b16 %v952, %v951
    %v958 = vpack.c.b16 %v954, %v953
    %v963 = vsel %vm212, %v852, 0
    %965 = vmatprep.subr.bf16.mxu0 0
    %966 = vmatpush1.bf16.msra.mxu0 0
    %967 = vmatprep.subr.bf16.mxu0 0
    %968 = vmatpush1.bf16.msra.mxu0 0
    %969 = vmatprep.subr.bf16.mxu0 0
    %970 = vmatpush1.bf16.msra.mxu0 0
    %971 = vmatprep.subr.bf16.mxu0 0
    %972 = vmatpush1.bf16.msra.mxu0 0
    %973 = vmatprep.subr.bf16.mxu0 0
    %974 = vmatpush1.bf16.msra.mxu0 %v958
    %975 = vmatprep.subr.bf16.mxu0 0
    %976 = vmatpush1.bf16.msra.mxu0 %v957
    %977 = vmatprep.subr.bf16.mxu0 0
    %978 = vmatpush1.bf16.msra.mxu0 %v956
    %979 = vmatprep.subr.bf16.mxu0 0
    %980 = vmatpush1.bf16.msra.mxu0 %v955
    %981 = vmatprep.subr.bf16.mxu0 0
    %982 = vmatpush2.bf16.msra.mxu0 0
    %983 = vmatprep.subr.bf16.mxu0 0
    %984 = vmatpush2.bf16.msra.mxu0 0
    %985 = vmatprep.subr.bf16.mxu0 0
    %986 = vmatpush2.bf16.msra.mxu0 0
    %987 = vmatprep.subr.bf16.mxu0 0
    %988 = vmatpush2.bf16.msra.mxu0 0
    %989 = vmatprep.subr.bf16.mxu0 0
    %990 = vmatpush2.bf16.msra.mxu0 0
    %991 = vmatprep.subr.bf16.mxu0 0
    %992 = vmatpush2.bf16.msra.mxu0 0
    %993 = vmatprep.subr.bf16.mxu0 0
    %994 = vmatpush2.bf16.msra.mxu0 0
    %995 = vmatprep.subr.bf16.mxu0 0
    %996 = vmatpush2.bf16.msra.mxu0 0
    %997 = vmatprep.mubr.bf16.mxu0 0
    %998 = vmatmul.mubr.bf16.gmra.mxu0 %v963
    %v999 = vpop.f32.mrf.mxu0
    %v1000 = vadd.f32 %v934, %v999
    %v1001 = vpop.f32.mrf.mxu0
    %v1002 = vpop.f32.mrf.mxu0
    %v1003 = vpop.f32.mrf.mxu0
    %1004 = vdwg.mxu0
    %v1005 = vld [vmem:[%s8 + $0x40] sm:$0xf]
    %v1006 = vld [vmem:[%s8 + $0x44] sm:$0xf]
    %v1007 = vld [vmem:[%s8 + $0x48] sm:$0xf]
    %v1008 = vld [vmem:[%s8 + $0x4c] sm:$0xf]
    %v1009 = vld [vmem:[%s8 + $0x50] sm:$0xf]
    %v1010 = vld [vmem:[%s8 + $0x54] sm:$0xf]
    %v1011 = vld [vmem:[%s8 + $0x58] sm:$0xf]
    %v1012 = vld [vmem:[%s8 + $0x5c] sm:$0xf]
    %v1014 = vrot.slane %v852, 1
    %v1023 = vunpack.c.l.b16 %v1005
    %v1024 = vunpack.c.l.b16 %v1006
    %v1025 = vunpack.c.l.b16 %v1007
    %v1026 = vunpack.c.l.b16 %v1008
    %v1027 = vunpack.c.l.b16 %v1009
    %v1028 = vunpack.c.l.b16 %v1010
    %v1029 = vunpack.c.l.b16 %v1011
    %v1030 = vunpack.c.l.b16 %v1012
    %v1031 = vpack.c.b16 %v1024, %v1023
    %v1032 = vpack.c.b16 %v1026, %v1025
    %v1033 = vpack.c.b16 %v1028, %v1027
    %v1034 = vpack.c.b16 %v1030, %v1029
    %v1040 = vsel %vm212, %v1014, 0
    %1042 = vmatprep.subr.bf16.mxu0 0
    %1043 = vmatpush1.bf16.msra.mxu0 0
    %1044 = vmatprep.subr.bf16.mxu0 0
    %1045 = vmatpush1.bf16.msra.mxu0 0
    %1046 = vmatprep.subr.bf16.mxu0 0
    %1047 = vmatpush1.bf16.msra.mxu0 0
    %1048 = vmatprep.subr.bf16.mxu0 0
    %1049 = vmatpush1.bf16.msra.mxu0 0
    %1050 = vmatprep.subr.bf16.mxu0 0
    %1051 = vmatpush1.bf16.msra.mxu0 %v1034
    %1052 = vmatprep.subr.bf16.mxu0 0
    %1053 = vmatpush1.bf16.msra.mxu0 %v1033
    %1054 = vmatprep.subr.bf16.mxu0 0
    %1055 = vmatpush1.bf16.msra.mxu0 %v1032
    %1056 = vmatprep.subr.bf16.mxu0 0
    %1057 = vmatpush1.bf16.msra.mxu0 %v1031
    %1058 = vmatprep.subr.bf16.mxu0 0
    %1059 = vmatpush2.bf16.msra.mxu0 0
    %1060 = vmatprep.subr.bf16.mxu0 0
    %1061 = vmatpush2.bf16.msra.mxu0 0
    %1062 = vmatprep.subr.bf16.mxu0 0
    %1063 = vmatpush2.bf16.msra.mxu0 0
    %1064 = vmatprep.subr.bf16.mxu0 0
    %1065 = vmatpush2.bf16.msra.mxu0 0
    %1066 = vmatprep.subr.bf16.mxu0 0
    %1067 = vmatpush2.bf16.msra.mxu0 0
    %1068 = vmatprep.subr.bf16.mxu0 0
    %1069 = vmatpush2.bf16.msra.mxu0 0
    %1070 = vmatprep.subr.bf16.mxu0 0
    %1071 = vmatpush2.bf16.msra.mxu0 0
    %1072 = vmatprep.subr.bf16.mxu0 0
    %1073 = vmatpush2.bf16.msra.mxu0 0
    %1074 = vmatprep.mubr.bf16.mxu0 0
    %1075 = vmatmul.mubr.bf16.gmra.mxu0 %v1040
    %v1076 = vpop.f32.mrf.mxu0
    %v1077 = vadd.f32 0.0, %v1076
    %v1078 = vpop.f32.mrf.mxu0
    %v1079 = vpop.f32.mrf.mxu0
    %v1080 = vpop.f32.mrf.mxu0
    %1081 = vdwg.mxu0
    %v1082 = vadd.f32 %v1000, %v1077
    %v1083 = vld [vmem:[%s8 + $0x60] sm:$0xf]
    %v1084 = vld [vmem:[%s8 + $0x64] sm:$0xf]
    %v1085 = vld [vmem:[%s8 + $0x68] sm:$0xf]
    %v1086 = vld [vmem:[%s8 + $0x6c] sm:$0xf]
    %v1087 = vld [vmem:[%s8 + $0x70] sm:$0xf]
    %v1088 = vld [vmem:[%s8 + $0x74] sm:$0xf]
    %v1089 = vld [vmem:[%s8 + $0x78] sm:$0xf]
    %v1090 = vld [vmem:[%s8 + $0x7c] sm:$0xf]
    %v1091 = vrot.slane %v870, 1
    %v1100 = vunpack.c.l.b16 %v1083
    %v1101 = vunpack.c.l.b16 %v1084
    %v1102 = vunpack.c.l.b16 %v1085
    %v1103 = vunpack.c.l.b16 %v1086
    %v1104 = vunpack.c.l.b16 %v1087
    %v1105 = vunpack.c.l.b16 %v1088
    %v1106 = vunpack.c.l.b16 %v1089
    %v1107 = vunpack.c.l.b16 %v1090
    %v1108 = vpack.c.b16 %v1101, %v1100
    %v1109 = vpack.c.b16 %v1103, %v1102
    %v1110 = vpack.c.b16 %v1105, %v1104
    %v1111 = vpack.c.b16 %v1107, %v1106
    %v1117 = vsel %vm212, %v1091, 0
    %1119 = vmatprep.subr.bf16.mxu0 0
    %1120 = vmatpush1.bf16.msra.mxu0 0
    %1121 = vmatprep.subr.bf16.mxu0 0
    %1122 = vmatpush1.bf16.msra.mxu0 0
    %1123 = vmatprep.subr.bf16.mxu0 0
    %1124 = vmatpush1.bf16.msra.mxu0 0
    %1125 = vmatprep.subr.bf16.mxu0 0
    %1126 = vmatpush1.bf16.msra.mxu0 0
    %1127 = vmatprep.subr.bf16.mxu0 0
    %1128 = vmatpush1.bf16.msra.mxu0 %v1111
    %1129 = vmatprep.subr.bf16.mxu0 0
    %1130 = vmatpush1.bf16.msra.mxu0 %v1110
    %1131 = vmatprep.subr.bf16.mxu0 0
    %1132 = vmatpush1.bf16.msra.mxu0 %v1109
    %1133 = vmatprep.subr.bf16.mxu0 0
    %1134 = vmatpush1.bf16.msra.mxu0 %v1108
    %1135 = vmatprep.subr.bf16.mxu0 0
    %1136 = vmatpush2.bf16.msra.mxu0 0
    %1137 = vmatprep.subr.bf16.mxu0 0
    %1138 = vmatpush2.bf16.msra.mxu0 0
    %1139 = vmatprep.subr.bf16.mxu0 0
    %1140 = vmatpush2.bf16.msra.mxu0 0
    %1141 = vmatprep.subr.bf16.mxu0 0
    %1142 = vmatpush2.bf16.msra.mxu0 0
    %1143 = vmatprep.subr.bf16.mxu0 0
    %1144 = vmatpush2.bf16.msra.mxu0 0
    %1145 = vmatprep.subr.bf16.mxu0 0
    %1146 = vmatpush2.bf16.msra.mxu0 0
    %1147 = vmatprep.subr.bf16.mxu0 0
    %1148 = vmatpush2.bf16.msra.mxu0 0
    %1149 = vmatprep.subr.bf16.mxu0 0
    %1150 = vmatpush2.bf16.msra.mxu0 0
    %1151 = vmatprep.mubr.bf16.mxu0 0
    %1152 = vmatmul.mubr.bf16.gmra.mxu0 %v1117
    %v1153 = vpop.f32.mrf.mxu0
    %v1154 = vadd.f32 0.0, %v1153
    %v1155 = vpop.f32.mrf.mxu0
    %v1156 = vpop.f32.mrf.mxu0
    %v1157 = vpop.f32.mrf.mxu0
    %1158 = vdwg.mxu0
    %v1159 = vadd.f32 %v1082, %v1154
    %v1160 = vld [vmem:[%s8 + $0x80] sm:$0xf]
    %v1161 = vld [vmem:[%s8 + $0x84] sm:$0xf]
    %v1162 = vld [vmem:[%s8 + $0x88] sm:$0xf]
    %v1163 = vld [vmem:[%s8 + $0x8c] sm:$0xf]
    %v1164 = vld [vmem:[%s8 + $0x90] sm:$0xf]
    %v1165 = vld [vmem:[%s8 + $0x94] sm:$0xf]
    %v1166 = vld [vmem:[%s8 + $0x98] sm:$0xf]
    %v1167 = vld [vmem:[%s8 + $0x9c] sm:$0xf]
    %v1168 = vrot.slane %v852, 2
    %v1177 = vunpack.c.l.b16 %v1160
    %v1178 = vunpack.c.l.b16 %v1161
    %v1179 = vunpack.c.l.b16 %v1162
    %v1180 = vunpack.c.l.b16 %v1163
    %v1181 = vunpack.c.l.b16 %v1164
    %v1182 = vunpack.c.l.b16 %v1165
    %v1183 = vunpack.c.l.b16 %v1166
    %v1184 = vunpack.c.l.b16 %v1167
    %v1185 = vpack.c.b16 %v1178, %v1177
    %v1186 = vpack.c.b16 %v1180, %v1179
    %v1187 = vpack.c.b16 %v1182, %v1181
    %v1188 = vpack.c.b16 %v1184, %v1183
    %v1194 = vsel %vm212, %v1168, 0
    %1196 = vmatprep.subr.bf16.mxu0 0
    %1197 = vmatpush1.bf16.msra.mxu0 0
    %1198 = vmatprep.subr.bf16.mxu0 0
    %1199 = vmatpush1.bf16.msra.mxu0 0
    %1200 = vmatprep.subr.bf16.mxu0 0
    %1201 = vmatpush1.bf16.msra.mxu0 0
    %1202 = vmatprep.subr.bf16.mxu0 0
    %1203 = vmatpush1.bf16.msra.mxu0 0
    %1204 = vmatprep.subr.bf16.mxu0 0
    %1205 = vmatpush1.bf16.msra.mxu0 %v1188
    %1206 = vmatprep.subr.bf16.mxu0 0
    %1207 = vmatpush1.bf16.msra.mxu0 %v1187
    %1208 = vmatprep.subr.bf16.mxu0 0
    %1209 = vmatpush1.bf16.msra.mxu0 %v1186
    %1210 = vmatprep.subr.bf16.mxu0 0
    %1211 = vmatpush1.bf16.msra.mxu0 %v1185
    %1212 = vmatprep.subr.bf16.mxu0 0
    %1213 = vmatpush2.bf16.msra.mxu0 0
    %1214 = vmatprep.subr.bf16.mxu0 0
    %1215 = vmatpush2.bf16.msra.mxu0 0
    %1216 = vmatprep.subr.bf16.mxu0 0
    %1217 = vmatpush2.bf16.msra.mxu0 0
    %1218 = vmatprep.subr.bf16.mxu0 0
    %1219 = vmatpush2.bf16.msra.mxu0 0
    %1220 = vmatprep.subr.bf16.mxu0 0
    %1221 = vmatpush2.bf16.msra.mxu0 0
    %1222 = vmatprep.subr.bf16.mxu0 0
    %1223 = vmatpush2.bf16.msra.mxu0 0
    %1224 = vmatprep.subr.bf16.mxu0 0
    %1225 = vmatpush2.bf16.msra.mxu0 0
    %1226 = vmatprep.subr.bf16.mxu0 0
    %1227 = vmatpush2.bf16.msra.mxu0 0
    %1228 = vmatprep.mubr.bf16.mxu0 0
    %1229 = vmatmul.mubr.bf16.gmra.mxu0 %v1194
    %v1230 = vpop.f32.mrf.mxu0
    %v1231 = vadd.f32 0.0, %v1230
    %v1232 = vpop.f32.mrf.mxu0
    %v1233 = vpop.f32.mrf.mxu0
    %v1234 = vpop.f32.mrf.mxu0
    %1235 = vdwg.mxu0
    %v1236 = vadd.f32 %v1159, %v1231
    %v1237 = vld [vmem:[%s8 + $0xa0] sm:$0xf]
    %v1238 = vld [vmem:[%s8 + $0xa4] sm:$0xf]
    %v1239 = vld [vmem:[%s8 + $0xa8] sm:$0xf]
    %v1240 = vld [vmem:[%s8 + $0xac] sm:$0xf]
    %v1241 = vld [vmem:[%s8 + $0xb0] sm:$0xf]
    %v1242 = vld [vmem:[%s8 + $0xb4] sm:$0xf]
    %v1243 = vld [vmem:[%s8 + $0xb8] sm:$0xf]
    %v1244 = vld [vmem:[%s8 + $0xbc] sm:$0xf]
    %v1245 = vrot.slane %v870, 2
    %v1254 = vunpack.c.l.b16 %v1237
    %v1255 = vunpack.c.l.b16 %v1238
    %v1256 = vunpack.c.l.b16 %v1239
    %v1257 = vunpack.c.l.b16 %v1240
    %v1258 = vunpack.c.l.b16 %v1241
    %v1259 = vunpack.c.l.b16 %v1242
    %v1260 = vunpack.c.l.b16 %v1243
    %v1261 = vunpack.c.l.b16 %v1244
    %v1262 = vpack.c.b16 %v1255, %v1254
    %v1263 = vpack.c.b16 %v1257, %v1256
    %v1264 = vpack.c.b16 %v1259, %v1258
    %v1265 = vpack.c.b16 %v1261, %v1260
    %v1271 = vsel %vm212, %v1245, 0
    %1273 = vmatprep.subr.bf16.mxu0 0
    %1274 = vmatpush1.bf16.msra.mxu0 0
    %1275 = vmatprep.subr.bf16.mxu0 0
    %1276 = vmatpush1.bf16.msra.mxu0 0
    %1277 = vmatprep.subr.bf16.mxu0 0
    %1278 = vmatpush1.bf16.msra.mxu0 0
    %1279 = vmatprep.subr.bf16.mxu0 0
    %1280 = vmatpush1.bf16.msra.mxu0 0
    %1281 = vmatprep.subr.bf16.mxu0 0
    %1282 = vmatpush1.bf16.msra.mxu0 %v1265
    %1283 = vmatprep.subr.bf16.mxu0 0
    %1284 = vmatpush1.bf16.msra.mxu0 %v1264
    %1285 = vmatprep.subr.bf16.mxu0 0
    %1286 = vmatpush1.bf16.msra.mxu0 %v1263
    %1287 = vmatprep.subr.bf16.mxu0 0
    %1288 = vmatpush1.bf16.msra.mxu0 %v1262
    %1289 = vmatprep.subr.bf16.mxu0 0
    %1290 = vmatpush2.bf16.msra.mxu0 0
    %1291 = vmatprep.subr.bf16.mxu0 0
    %1292 = vmatpush2.bf16.msra.mxu0 0
    %1293 = vmatprep.subr.bf16.mxu0 0
    %1294 = vmatpush2.bf16.msra.mxu0 0
    %1295 = vmatprep.subr.bf16.mxu0 0
    %1296 = vmatpush2.bf16.msra.mxu0 0
    %1297 = vmatprep.subr.bf16.mxu0 0
    %1298 = vmatpush2.bf16.msra.mxu0 0
    %1299 = vmatprep.subr.bf16.mxu0 0
    %1300 = vmatpush2.bf16.msra.mxu0 0
    %1301 = vmatprep.subr.bf16.mxu0 0
    %1302 = vmatpush2.bf16.msra.mxu0 0
    %1303 = vmatprep.subr.bf16.mxu0 0
    %1304 = vmatpush2.bf16.msra.mxu0 0
    %1305 = vmatprep.mubr.bf16.mxu0 0
    %1306 = vmatmul.mubr.bf16.gmra.mxu0 %v1271
    %v1307 = vpop.f32.mrf.mxu0
    %v1308 = vadd.f32 0.0, %v1307
    %v1309 = vpop.f32.mrf.mxu0
    %v1310 = vpop.f32.mrf.mxu0
    %v1311 = vpop.f32.mrf.mxu0
    %1312 = vdwg.mxu0
    %v1313 = vadd.f32 %v1236, %v1308
    %v1314 = vld [vmem:[%s8 + $0xc0] sm:$0xf]
    %v1315 = vld [vmem:[%s8 + $0xc4] sm:$0xf]
    %v1316 = vld [vmem:[%s8 + $0xc8] sm:$0xf]
    %v1317 = vld [vmem:[%s8 + $0xcc] sm:$0xf]
    %v1318 = vld [vmem:[%s8 + $0xd0] sm:$0xf]
    %v1319 = vld [vmem:[%s8 + $0xd4] sm:$0xf]
    %v1320 = vld [vmem:[%s8 + $0xd8] sm:$0xf]
    %v1321 = vld [vmem:[%s8 + $0xdc] sm:$0xf]
    %v1322 = vrot.slane %v852, 3
    %v1331 = vunpack.c.l.b16 %v1314
    %v1332 = vunpack.c.l.b16 %v1315
    %v1333 = vunpack.c.l.b16 %v1316
    %v1334 = vunpack.c.l.b16 %v1317
    %v1335 = vunpack.c.l.b16 %v1318
    %v1336 = vunpack.c.l.b16 %v1319
    %v1337 = vunpack.c.l.b16 %v1320
    %v1338 = vunpack.c.l.b16 %v1321
    %v1339 = vpack.c.b16 %v1332, %v1331
    %v1340 = vpack.c.b16 %v1334, %v1333
    %v1341 = vpack.c.b16 %v1336, %v1335
    %v1342 = vpack.c.b16 %v1338, %v1337
    %v1348 = vsel %vm212, %v1322, 0
    %1350 = vmatprep.subr.bf16.mxu0 0
    %1351 = vmatpush1.bf16.msra.mxu0 0
    %1352 = vmatprep.subr.bf16.mxu0 0
    %1353 = vmatpush1.bf16.msra.mxu0 0
    %1354 = vmatprep.subr.bf16.mxu0 0
    %1355 = vmatpush1.bf16.msra.mxu0 0
    %1356 = vmatprep.subr.bf16.mxu0 0
    %1357 = vmatpush1.bf16.msra.mxu0 0
    %1358 = vmatprep.subr.bf16.mxu0 0
    %1359 = vmatpush1.bf16.msra.mxu0 %v1342
    %1360 = vmatprep.subr.bf16.mxu0 0
    %1361 = vmatpush1.bf16.msra.mxu0 %v1341
    %1362 = vmatprep.subr.bf16.mxu0 0
    %1363 = vmatpush1.bf16.msra.mxu0 %v1340
    %1364 = vmatprep.subr.bf16.mxu0 0
    %1365 = vmatpush1.bf16.msra.mxu0 %v1339
    %1366 = vmatprep.subr.bf16.mxu0 0
    %1367 = vmatpush2.bf16.msra.mxu0 0
    %1368 = vmatprep.subr.bf16.mxu0 0
    %1369 = vmatpush2.bf16.msra.mxu0 0
    %1370 = vmatprep.subr.bf16.mxu0 0
    %1371 = vmatpush2.bf16.msra.mxu0 0
    %1372 = vmatprep.subr.bf16.mxu0 0
    %1373 = vmatpush2.bf16.msra.mxu0 0
    %1374 = vmatprep.subr.bf16.mxu0 0
    %1375 = vmatpush2.bf16.msra.mxu0 0
    %1376 = vmatprep.subr.bf16.mxu0 0
    %1377 = vmatpush2.bf16.msra.mxu0 0
    %1378 = vmatprep.subr.bf16.mxu0 0
    %1379 = vmatpush2.bf16.msra.mxu0 0
    %1380 = vmatprep.subr.bf16.mxu0 0
    %1381 = vmatpush2.bf16.msra.mxu0 0
    %1382 = vmatprep.mubr.bf16.mxu0 0
    %1383 = vmatmul.mubr.bf16.gmra.mxu0 %v1348
    %v1384 = vpop.f32.mrf.mxu0
    %v1385 = vadd.f32 0.0, %v1384
    %v1386 = vpop.f32.mrf.mxu0
    %v1387 = vpop.f32.mrf.mxu0
    %v1388 = vpop.f32.mrf.mxu0
    %1389 = vdwg.mxu0
    %v1390 = vadd.f32 %v1313, %v1385
    %v1391 = vld [vmem:[%s8 + $0xe0] sm:$0xf]
    %v1392 = vld [vmem:[%s8 + $0xe4] sm:$0xf]
    %v1393 = vld [vmem:[%s8 + $0xe8] sm:$0xf]
    %v1394 = vld [vmem:[%s8 + $0xec] sm:$0xf]
    %v1395 = vld [vmem:[%s8 + $0xf0] sm:$0xf]
    %v1396 = vld [vmem:[%s8 + $0xf4] sm:$0xf]
    %v1397 = vld [vmem:[%s8 + $0xf8] sm:$0xf]
    %v1398 = vld [vmem:[%s8 + $0xfc] sm:$0xf]
    %v1399 = vrot.slane %v870, 3
    %v1408 = vunpack.c.l.b16 %v1391
    %v1409 = vunpack.c.l.b16 %v1392
    %v1410 = vunpack.c.l.b16 %v1393
    %v1411 = vunpack.c.l.b16 %v1394
    %v1412 = vunpack.c.l.b16 %v1395
    %v1413 = vunpack.c.l.b16 %v1396
    %v1414 = vunpack.c.l.b16 %v1397
    %v1415 = vunpack.c.l.b16 %v1398
    %v1416 = vpack.c.b16 %v1409, %v1408
    %v1417 = vpack.c.b16 %v1411, %v1410
    %v1418 = vpack.c.b16 %v1413, %v1412
    %v1419 = vpack.c.b16 %v1415, %v1414
    %v1425 = vsel %vm212, %v1399, 0
    %1427 = vmatprep.subr.bf16.mxu0 0
    %1428 = vmatpush1.bf16.msra.mxu0 0
    %1429 = vmatprep.subr.bf16.mxu0 0
    %1430 = vmatpush1.bf16.msra.mxu0 0
    %1431 = vmatprep.subr.bf16.mxu0 0
    %1432 = vmatpush1.bf16.msra.mxu0 0
    %1433 = vmatprep.subr.bf16.mxu0 0
    %1434 = vmatpush1.bf16.msra.mxu0 0
    %1435 = vmatprep.subr.bf16.mxu0 0
    %1436 = vmatpush1.bf16.msra.mxu0 %v1419
    %1437 = vmatprep.subr.bf16.mxu0 0
    %1438 = vmatpush1.bf16.msra.mxu0 %v1418
    %1439 = vmatprep.subr.bf16.mxu0 0
    %1440 = vmatpush1.bf16.msra.mxu0 %v1417
    %1441 = vmatprep.subr.bf16.mxu0 0
    %1442 = vmatpush1.bf16.msra.mxu0 %v1416
    %1443 = vmatprep.subr.bf16.mxu0 0
    %1444 = vmatpush2.bf16.msra.mxu0 0
    %1445 = vmatprep.subr.bf16.mxu0 0
    %1446 = vmatpush2.bf16.msra.mxu0 0
    %1447 = vmatprep.subr.bf16.mxu0 0
    %1448 = vmatpush2.bf16.msra.mxu0 0
    %1449 = vmatprep.subr.bf16.mxu0 0
    %1450 = vmatpush2.bf16.msra.mxu0 0
    %1451 = vmatprep.subr.bf16.mxu0 0
    %1452 = vmatpush2.bf16.msra.mxu0 0
    %1453 = vmatprep.subr.bf16.mxu0 0
    %1454 = vmatpush2.bf16.msra.mxu0 0
    %1455 = vmatprep.subr.bf16.mxu0 0
    %1456 = vmatpush2.bf16.msra.mxu0 0
    %1457 = vmatprep.subr.bf16.mxu0 0
    %1458 = vmatpush2.bf16.msra.mxu0 0
    %1459 = vmatprep.mubr.bf16.mxu0 0
    %1460 = vmatmul.mubr.bf16.gmra.mxu0 %v1425
    %v1461 = vpop.f32.mrf.mxu0
    %v1462 = vadd.f32 0.0, %v1461
    %v1463 = vpop.f32.mrf.mxu0
    %v1464 = vpop.f32.mrf.mxu0
    %v1465 = vpop.f32.mrf.mxu0
    %1466 = vdwg.mxu0
    %v1467 = vadd.f32 %v1390, %v1462
    %1468 = vst.msk [vmem:[#allocation2 + $0x1] sm:$0x1] %vm785, %v1467
    %v1469 = vld [vmem:[#allocation2] sm:$0x3]
    %v1470 = vld [vmem:[%s10 + $0x8] sm:$0x1]
    %v1472 = vlaneseq
    %v1473 = vshrl.u32 %v1472, 7
    %v1474 = vsub.s32 0, %v1473
    %v1475 = vrot.slane %v1470, %v1474
    %1476 = vrot.lane.b32.xlu0 %v1475, 64
    %v1477 = vpop.permute.xlu0 %1476
    %v1479 = vadd.f32 %v1469, %v1477
    %v1480 = vld [vmem:[%s5] sm:$0xf]
    %v1481 = vld [vmem:[%s5 + $0xc] sm:$0xf]
    %v1482 = vld [vmem:[%s5 + $0x18] sm:$0xf]
    %v1483 = vld [vmem:[%s5 + $0x24] sm:$0xf]
    %v1484 = vpack.c.bf16 %v1479, %v1479
    %v1489 = vunpack.c.l.b16 %v1480
    %v1490 = vunpack.c.l.b16 %v1481
    %v1491 = vunpack.c.l.b16 %v1482
    %v1492 = vunpack.c.l.b16 %v1483
    %v1493 = vpack.c.b16 %v1490, %v1489
    %v1494 = vpack.c.b16 %v1492, %v1491
    %vm1497 = vcmask 261120
    %v1499 = vsel %vm1497, %v1484, 0
    %1501 = vmatprep.subr.bf16.mxu0 0
    %1502 = vmatpush1.bf16.msra.mxu0 0
    %1503 = vmatprep.subr.bf16.mxu0 0
    %1504 = vmatpush1.bf16.msra.mxu0 0
    %1505 = vmatprep.subr.bf16.mxu0 0
    %1506 = vmatpush1.bf16.msra.mxu0 0
    %1507 = vmatprep.subr.bf16.mxu0 0
    %1508 = vmatpush1.bf16.msra.mxu0 0
    %1509 = vmatprep.subr.bf16.mxu0 0
    %1510 = vmatpush1.bf16.msra.mxu0 0
    %1511 = vmatprep.subr.bf16.mxu0 0
    %1512 = vmatpush1.bf16.msra.mxu0 0
    %1513 = vmatprep.subr.bf16.mxu0 0
    %1514 = vmatpush1.bf16.msra.mxu0 %v1494
    %1515 = vmatprep.subr.bf16.mxu0 0
    %1516 = vmatpush1.bf16.msra.mxu0 %v1493
    %1517 = vmatprep.subr.bf16.mxu0 0
    %1518 = vmatpush2.bf16.msra.mxu0 0
    %1519 = vmatprep.subr.bf16.mxu0 0
    %1520 = vmatpush2.bf16.msra.mxu0 0
    %1521 = vmatprep.subr.bf16.mxu0 0
    %1522 = vmatpush2.bf16.msra.mxu0 0
    %1523 = vmatprep.subr.bf16.mxu0 0
    %1524 = vmatpush2.bf16.msra.mxu0 0
    %1525 = vmatprep.subr.bf16.mxu0 0
    %1526 = vmatpush2.bf16.msra.mxu0 0
    %1527 = vmatprep.subr.bf16.mxu0 0
    %1528 = vmatpush2.bf16.msra.mxu0 0
    %1529 = vmatprep.subr.bf16.mxu0 0
    %1530 = vmatpush2.bf16.msra.mxu0 0
    %1531 = vmatprep.subr.bf16.mxu0 0
    %1532 = vmatpush2.bf16.msra.mxu0 0
    %1533 = vmatprep.mubr.bf16.mxu0 0
    %1534 = vmatmul.mubr.bf16.gmra.mxu0 %v1499
    %v1535 = vpop.f32.mrf.mxu0
    %v1536 = vadd.f32 %v88, %v1535
    %v1537 = vpop.f32.mrf.mxu0
    %v1538 = vpop.f32.mrf.mxu0
    %v1539 = vpop.f32.mrf.mxu0
    %1540 = vdwg.mxu0
    %1541 = vrot.lane.b32.xlu0 %v1475, 32
    %v1542 = vpop.permute.xlu0 %1541
    %v1544 = vadd.f32 %v1536, %v1542
    %v1545 = vmax.f32 %v1544, 0.0
    %v1546 = vpack.c.bf16 %v1545, %v1545
    %v1547 = vld [vmem:[%s10 + $0x9] sm:$0x1]
    %v1549 = vlaneseq
    %v1550 = vshrl.u32 %v1549, 7
    %v1551 = vsub.s32 0, %v1550
    %v1552 = vrot.slane %v1547, %v1551
    %1554 = vrot.lane.b32.xlu0 %v1493, 96
    %v1555 = vpop.permute.xlu0 %1554
    %1556 = vrot.lane.b32.xlu0 %v1494, 96
    %v1557 = vpop.permute.xlu0 %1556
    %v1561 = vsel %vm1497, %v1546, 0
    %1563 = vmatprep.subr.bf16.mxu0 0
    %1564 = vmatpush1.bf16.msra.mxu0 0
    %1565 = vmatprep.subr.bf16.mxu0 0
    %1566 = vmatpush1.bf16.msra.mxu0 0
    %1567 = vmatprep.subr.bf16.mxu0 0
    %1568 = vmatpush1.bf16.msra.mxu0 0
    %1569 = vmatprep.subr.bf16.mxu0 0
    %1570 = vmatpush1.bf16.msra.mxu0 0
    %1571 = vmatprep.subr.bf16.mxu0 0
    %1572 = vmatpush1.bf16.msra.mxu0 0
    %1573 = vmatprep.subr.bf16.mxu0 0
    %1574 = vmatpush1.bf16.msra.mxu0 0
    %1575 = vmatprep.subr.bf16.mxu0 0
    %1576 = vmatpush1.bf16.msra.mxu0 %v1557
    %1577 = vmatprep.subr.bf16.mxu0 0
    %1578 = vmatpush1.bf16.msra.mxu0 %v1555
    %1579 = vmatprep.subr.bf16.mxu0 0
    %1580 = vmatpush2.bf16.msra.mxu0 0
    %1581 = vmatprep.subr.bf16.mxu0 0
    %1582 = vmatpush2.bf16.msra.mxu0 0
    %1583 = vmatprep.subr.bf16.mxu0 0
    %1584 = vmatpush2.bf16.msra.mxu0 0
    %1585 = vmatprep.subr.bf16.mxu0 0
    %1586 = vmatpush2.bf16.msra.mxu0 0
    %1587 = vmatprep.subr.bf16.mxu0 0
    %1588 = vmatpush2.bf16.msra.mxu0 0
    %1589 = vmatprep.subr.bf16.mxu0 0
    %1590 = vmatpush2.bf16.msra.mxu0 0
    %1591 = vmatprep.subr.bf16.mxu0 0
    %1592 = vmatpush2.bf16.msra.mxu0 0
    %1593 = vmatprep.subr.bf16.mxu0 0
    %1594 = vmatpush2.bf16.msra.mxu0 0
    %1595 = vmatprep.mubr.bf16.mxu0 0
    %1596 = vmatmul.mubr.bf16.gmra.mxu0 %v1561
    %v1597 = vpop.f32.mrf.mxu0
    %v1598 = vadd.f32 %v1552, %v1597
    %v1599 = vpop.f32.mrf.mxu0
    %v1600 = vpop.f32.mrf.mxu0
    %v1601 = vpop.f32.mrf.mxu0
    %1602 = vdwg.mxu0
    %v1603 = vpack.c.bf16 %v1598, %v1598
    %1604 = vrot.lane.b32.xlu0 %v1493, 64
    %v1605 = vpop.permute.xlu0 %1604
    %1606 = vrot.lane.b32.xlu0 %v1494, 64
    %v1607 = vpop.permute.xlu0 %1606
    %1611 = vrot.lane.b32.xlu0 %v88, 96
    %v1612 = vpop.permute.xlu0 %1611
    %v1615 = vsel %vm1497, %v1603, 0
    %1617 = vmatprep.subr.bf16.mxu0 0
    %1618 = vmatpush1.bf16.msra.mxu0 0
    %1619 = vmatprep.subr.bf16.mxu0 0
    %1620 = vmatpush1.bf16.msra.mxu0 0
    %1621 = vmatprep.subr.bf16.mxu0 0
    %1622 = vmatpush1.bf16.msra.mxu0 0
    %1623 = vmatprep.subr.bf16.mxu0 0
    %1624 = vmatpush1.bf16.msra.mxu0 0
    %1625 = vmatprep.subr.bf16.mxu0 0
    %1626 = vmatpush1.bf16.msra.mxu0 0
    %1627 = vmatprep.subr.bf16.mxu0 0
    %1628 = vmatpush1.bf16.msra.mxu0 0
    %1629 = vmatprep.subr.bf16.mxu0 0
    %1630 = vmatpush1.bf16.msra.mxu0 %v1607
    %1631 = vmatprep.subr.bf16.mxu0 0
    %1632 = vmatpush1.bf16.msra.mxu0 %v1605
    %1633 = vmatprep.subr.bf16.mxu0 0
    %1634 = vmatpush2.bf16.msra.mxu0 0
    %1635 = vmatprep.subr.bf16.mxu0 0
    %1636 = vmatpush2.bf16.msra.mxu0 0
    %1637 = vmatprep.subr.bf16.mxu0 0
    %1638 = vmatpush2.bf16.msra.mxu0 0
    %1639 = vmatprep.subr.bf16.mxu0 0
    %1640 = vmatpush2.bf16.msra.mxu0 0
    %1641 = vmatprep.subr.bf16.mxu0 0
    %1642 = vmatpush2.bf16.msra.mxu0 0
    %1643 = vmatprep.subr.bf16.mxu0 0
    %1644 = vmatpush2.bf16.msra.mxu0 0
    %1645 = vmatprep.subr.bf16.mxu0 0
    %1646 = vmatpush2.bf16.msra.mxu0 0
    %1647 = vmatprep.subr.bf16.mxu0 0
    %1648 = vmatpush2.bf16.msra.mxu0 0
    %1649 = vmatprep.mubr.bf16.mxu0 0
    %1650 = vmatmul.mubr.bf16.gmra.mxu0 %v1615
    %v1651 = vpop.f32.mrf.mxu0
    %v1652 = vadd.f32 %v1612, %v1651
    %v1653 = vpop.f32.mrf.mxu0
    %v1654 = vpop.f32.mrf.mxu0
    %v1655 = vpop.f32.mrf.mxu0
    %1656 = vdwg.mxu0
    %1657 = vrot.lane.b32.xlu0 %v1552, 96
    %v1658 = vpop.permute.xlu0 %1657
    %v1660 = vadd.f32 %v1652, %v1658
    %v1661 = vmax.f32 %v1660, 0.0
    %v1662 = vld [vmem:[%s5 + $0x8] sm:$0xf]
    %v1663 = vld [vmem:[%s5 + $0x14] sm:$0xf]
    %v1664 = vld [vmem:[%s5 + $0x20] sm:$0xf]
    %v1665 = vld [vmem:[%s5 + $0x2c] sm:$0xf]
    %v1666 = vpack.c.bf16 %v1661, %v1661
    %v1667 = vld [vmem:[%s10 + $0xa] sm:$0x1]
    %v1669 = vlaneseq
    %v1670 = vshrl.u32 %v1669, 7
    %v1671 = vsub.s32 0, %v1670
    %v1672 = vrot.slane %v1667, %v1671
    %v1677 = vunpack.c.l.b16 %v1662
    %v1678 = vunpack.c.l.b16 %v1663
    %v1679 = vunpack.c.l.b16 %v1664
    %v1680 = vunpack.c.l.b16 %v1665
    %v1681 = vpack.c.b16 %v1678, %v1677
    %v1682 = vpack.c.b16 %v1680, %v1679
    %1685 = vrot.lane.b32.xlu0 %v1672, 64
    %v1686 = vpop.permute.xlu0 %1685
    %v1689 = vsel %vm1497, %v1666, 0
    %1691 = vmatprep.subr.bf16.mxu0 0
    %1692 = vmatpush1.bf16.msra.mxu0 0
    %1693 = vmatprep.subr.bf16.mxu0 0
    %1694 = vmatpush1.bf16.msra.mxu0 0
    %1695 = vmatprep.subr.bf16.mxu0 0
    %1696 = vmatpush1.bf16.msra.mxu0 0
    %1697 = vmatprep.subr.bf16.mxu0 0
    %1698 = vmatpush1.bf16.msra.mxu0 0
    %1699 = vmatprep.subr.bf16.mxu0 0
    %1700 = vmatpush1.bf16.msra.mxu0 0
    %1701 = vmatprep.subr.bf16.mxu0 0
    %1702 = vmatpush1.bf16.msra.mxu0 0
    %1703 = vmatprep.subr.bf16.mxu0 0
    %1704 = vmatpush1.bf16.msra.mxu0 %v1682
    %1705 = vmatprep.subr.bf16.mxu0 0
    %1706 = vmatpush1.bf16.msra.mxu0 %v1681
    %1707 = vmatprep.subr.bf16.mxu0 0
    %1708 = vmatpush2.bf16.msra.mxu0 0
    %1709 = vmatprep.subr.bf16.mxu0 0
    %1710 = vmatpush2.bf16.msra.mxu0 0
    %1711 = vmatprep.subr.bf16.mxu0 0
    %1712 = vmatpush2.bf16.msra.mxu0 0
    %1713 = vmatprep.subr.bf16.mxu0 0
    %1714 = vmatpush2.bf16.msra.mxu0 0
    %1715 = vmatprep.subr.bf16.mxu0 0
    %1716 = vmatpush2.bf16.msra.mxu0 0
    %1717 = vmatprep.subr.bf16.mxu0 0
    %1718 = vmatpush2.bf16.msra.mxu0 0
    %1719 = vmatprep.subr.bf16.mxu0 0
    %1720 = vmatpush2.bf16.msra.mxu0 0
    %1721 = vmatprep.subr.bf16.mxu0 0
    %1722 = vmatpush2.bf16.msra.mxu0 0
    %1723 = vmatprep.mubr.bf16.mxu0 0
    %1724 = vmatmul.mubr.bf16.gmra.mxu0 %v1689
    %v1725 = vpop.f32.mrf.mxu0
    %v1726 = vadd.f32 %v1686, %v1725
    %v1727 = vpop.f32.mrf.mxu0
    %v1728 = vpop.f32.mrf.mxu0
    %v1729 = vpop.f32.mrf.mxu0
    %1730 = vdwg.mxu0
    %vm1731 = vcmask 58368
    %1732 = vst.msk [vmem:[#allocation3] sm:$0x3] %vm1731, %v1726
    %v1733 = vld [vmem:[%s2] sm:$0x3]
    %vm1734 = vcmp.ne.f32.partialorder %v1733, %v1733
    %v1735 = vsel %vm1734, 1.0, 0.0
    %v1736 = vsel %vm1731, %v1735, 0.0
    %1737 = vadd.xlane.f32.xlu0 %v1736
    %v1738 = vpop.xlane.xlu0 %1737
    %v1739 = vrot.slane %v1738, 4
    %v1740 = vadd.f32 %v1738, %v1739
    %v1741 = vrot.slane %v1740, 2
    %v1742 = vadd.f32 %v1740, %v1741
    %v1743 = vrot.slane %v1742, 1
    %v1744 = vadd.f32 %v1742, %v1743
    %s1745 = vtos %v1744
    %v1746 = vstv %s1745
    %vm1747 = vcmp.gt.f32.partialorder %v1746, 0.0
    %v1748 = vsel %vm1747, 1, 0
    %vm1749 = vcmp.eq.s32.totalorder %v1748, 1
    %v1750 = vsel %vm1749, %v1726, %v1733
    %v1751 = vld [vmem:[%s6] sm:$0xf]
    %v1752 = vpack.c.bf16 %v1750, %v1750
    %1753 = vrot.lane.b32.xlu0 %v88, 64
    %v1754 = vpop.permute.xlu0 %1753
    %vm1756 = vcmask 64512
    %v1758 = vsel %vm1756, %v1752, 0
    %vm1760 = vcmask 1043456
    %v1762 = vsel %vm1760, %v1751, 0
    %1764 = vmatprep.subr.bf16.mxu0 0
    %1765 = vmatpush1.bf16.msra.mxu0 0
    %1766 = vmatprep.subr.bf16.mxu0 0
    %1767 = vmatpush1.bf16.msra.mxu0 0
    %1768 = vmatprep.subr.bf16.mxu0 0
    %1769 = vmatpush1.bf16.msra.mxu0 0
    %1770 = vmatprep.subr.bf16.mxu0 0
    %1771 = vmatpush1.bf16.msra.mxu0 0
    %1772 = vmatprep.subr.bf16.mxu0 0
    %1773 = vmatpush1.bf16.msra.mxu0 0
    %1774 = vmatprep.subr.bf16.mxu0 0
    %1775 = vmatpush1.bf16.msra.mxu0 0
    %1776 = vmatprep.subr.bf16.mxu0 0
    %1777 = vmatpush1.bf16.msra.mxu0 0
    %1778 = vmatprep.subr.bf16.mxu0 0
    %1779 = vmatpush1.bf16.msra.mxu0 %v1762
    %1780 = vmatprep.subr.bf16.mxu0 0
    %1781 = vmatpush2.bf16.msra.mxu0 0
    %1782 = vmatprep.subr.bf16.mxu0 0
    %1783 = vmatpush2.bf16.msra.mxu0 0
    %1784 = vmatprep.subr.bf16.mxu0 0
    %1785 = vmatpush2.bf16.msra.mxu0 0
    %1786 = vmatprep.subr.bf16.mxu0 0
    %1787 = vmatpush2.bf16.msra.mxu0 0
    %1788 = vmatprep.subr.bf16.mxu0 0
    %1789 = vmatpush2.bf16.msra.mxu0 0
    %1790 = vmatprep.subr.bf16.mxu0 0
    %1791 = vmatpush2.bf16.msra.mxu0 0
    %1792 = vmatprep.subr.bf16.mxu0 0
    %1793 = vmatpush2.bf16.msra.mxu0 0
    %1794 = vmatprep.subr.bf16.mxu0 0
    %1795 = vmatpush2.bf16.msra.mxu0 0
    %1796 = vmatprep.mubr.bf16.mxu0 0
    %1797 = vmatmul.mubr.bf16.gmra.mxu0 %v1758
    %v1798 = vpop.f32.mrf.mxu0
    %v1799 = vadd.f32 %v1754, %v1798
    %v1800 = vpop.f32.mrf.mxu0
    %v1801 = vpop.f32.mrf.mxu0
    %v1802 = vpop.f32.mrf.mxu0
    %1803 = vdwg.mxu0
    %v1804 = vld [vmem:[%s10 + $0x9] sm:$0x1]
    %v1806 = vlaneseq
    %v1807 = vshrl.u32 %v1806, 7
    %v1808 = vsub.s32 0, %v1807
    %v1809 = vrot.slane %v1804, %v1808
    %1810 = vrot.lane.b32.xlu0 %v1809, 64
    %v1811 = vpop.permute.xlu0 %1810
    %v1813 = vadd.f32 %v1799, %v1811
    %v1814 = vmax.f32 %v1813, 0.0
    %v1815 = vld [vmem:[%s5] sm:$0xf]
    %v1816 = vld [vmem:[%s5 + $0xc] sm:$0xf]
    %v1817 = vld [vmem:[%s5 + $0x18] sm:$0xf]
    %v1818 = vld [vmem:[%s5 + $0x24] sm:$0xf]
    %v1819 = vpack.c.bf16 %v1814, %v1814
    %v1824 = vunpack.c.l.b16 %v1815
    %v1825 = vunpack.c.l.b16 %v1816
    %v1826 = vunpack.c.l.b16 %v1817
    %v1827 = vunpack.c.l.b16 %v1818
    %v1828 = vpack.c.b16 %v1825, %v1824
    %v1829 = vpack.c.b16 %v1827, %v1826
    %1830 = vrot.lane.b32.xlu0 %v1828, 32
    %v1831 = vpop.permute.xlu0 %1830
    %1832 = vrot.lane.b32.xlu0 %v1829, 32
    %v1833 = vpop.permute.xlu0 %1832
    %1836 = vrot.lane.b32.xlu0 %v1809, 32
    %v1837 = vpop.permute.xlu0 %1836
    %v1840 = vsel %vm1497, %v1819, 0
    %1842 = vmatprep.subr.bf16.mxu0 0
    %1843 = vmatpush1.bf16.msra.mxu0 0
    %1844 = vmatprep.subr.bf16.mxu0 0
    %1845 = vmatpush1.bf16.msra.mxu0 0
    %1846 = vmatprep.subr.bf16.mxu0 0
    %1847 = vmatpush1.bf16.msra.mxu0 0
    %1848 = vmatprep.subr.bf16.mxu0 0
    %1849 = vmatpush1.bf16.msra.mxu0 0
    %1850 = vmatprep.subr.bf16.mxu0 0
    %1851 = vmatpush1.bf16.msra.mxu0 0
    %1852 = vmatprep.subr.bf16.mxu0 0
    %1853 = vmatpush1.bf16.msra.mxu0 0
    %1854 = vmatprep.subr.bf16.mxu0 0
    %1855 = vmatpush1.bf16.msra.mxu0 %v1833
    %1856 = vmatprep.subr.bf16.mxu0 0
    %1857 = vmatpush1.bf16.msra.mxu0 %v1831
    %1858 = vmatprep.subr.bf16.mxu0 0
    %1859 = vmatpush2.bf16.msra.mxu0 0
    %1860 = vmatprep.subr.bf16.mxu0 0
    %1861 = vmatpush2.bf16.msra.mxu0 0
    %1862 = vmatprep.subr.bf16.mxu0 0
    %1863 = vmatpush2.bf16.msra.mxu0 0
    %1864 = vmatprep.subr.bf16.mxu0 0
    %1865 = vmatpush2.bf16.msra.mxu0 0
    %1866 = vmatprep.subr.bf16.mxu0 0
    %1867 = vmatpush2.bf16.msra.mxu0 0
    %1868 = vmatprep.subr.bf16.mxu0 0
    %1869 = vmatpush2.bf16.msra.mxu0 0
    %1870 = vmatprep.subr.bf16.mxu0 0
    %1871 = vmatpush2.bf16.msra.mxu0 0
    %1872 = vmatprep.subr.bf16.mxu0 0
    %1873 = vmatpush2.bf16.msra.mxu0 0
    %1874 = vmatprep.mubr.bf16.mxu0 0
    %1875 = vmatmul.mubr.bf16.gmra.mxu0 %v1840
    %v1876 = vpop.f32.mrf.mxu0
    %v1877 = vadd.f32 %v1837, %v1876
    %v1878 = vpop.f32.mrf.mxu0
    %v1879 = vpop.f32.mrf.mxu0
    %v1880 = vpop.f32.mrf.mxu0
    %1881 = vdwg.mxu0
    %v1882 = vld [vmem:[%s5 + $0x4] sm:$0xf]
    %v1883 = vld [vmem:[%s5 + $0x10] sm:$0xf]
    %v1884 = vld [vmem:[%s5 + $0x1c] sm:$0xf]
    %v1885 = vld [vmem:[%s5 + $0x28] sm:$0xf]
    %v1886 = vpack.c.bf16 %v1877, %v1877
    %v1891 = vunpack.c.l.b16 %v1882
    %v1892 = vunpack.c.l.b16 %v1883
    %v1893 = vunpack.c.l.b16 %v1884
    %v1894 = vunpack.c.l.b16 %v1885
    %v1895 = vpack.c.b16 %v1892, %v1891
    %v1896 = vpack.c.b16 %v1894, %v1893
    %1899 = vrot.lane.b32.xlu0 %v88, 32
    %v1900 = vpop.permute.xlu0 %1899
    %v1903 = vsel %vm1497, %v1886, 0
    %1905 = vmatprep.subr.bf16.mxu0 0
    %1906 = vmatpush1.bf16.msra.mxu0 0
    %1907 = vmatprep.subr.bf16.mxu0 0
    %1908 = vmatpush1.bf16.msra.mxu0 0
    %1909 = vmatprep.subr.bf16.mxu0 0
    %1910 = vmatpush1.bf16.msra.mxu0 0
    %1911 = vmatprep.subr.bf16.mxu0 0
    %1912 = vmatpush1.bf16.msra.mxu0 0
    %1913 = vmatprep.subr.bf16.mxu0 0
    %1914 = vmatpush1.bf16.msra.mxu0 0
    %1915 = vmatprep.subr.bf16.mxu0 0
    %1916 = vmatpush1.bf16.msra.mxu0 0
    %1917 = vmatprep.subr.bf16.mxu0 0
    %1918 = vmatpush1.bf16.msra.mxu0 %v1896
    %1919 = vmatprep.subr.bf16.mxu0 0
    %1920 = vmatpush1.bf16.msra.mxu0 %v1895
    %1921 = vmatprep.subr.bf16.mxu0 0
    %1922 = vmatpush2.bf16.msra.mxu0 0
    %1923 = vmatprep.subr.bf16.mxu0 0
    %1924 = vmatpush2.bf16.msra.mxu0 0
    %1925 = vmatprep.subr.bf16.mxu0 0
    %1926 = vmatpush2.bf16.msra.mxu0 0
    %1927 = vmatprep.subr.bf16.mxu0 0
    %1928 = vmatpush2.bf16.msra.mxu0 0
    %1929 = vmatprep.subr.bf16.mxu0 0
    %1930 = vmatpush2.bf16.msra.mxu0 0
    %1931 = vmatprep.subr.bf16.mxu0 0
    %1932 = vmatpush2.bf16.msra.mxu0 0
    %1933 = vmatprep.subr.bf16.mxu0 0
    %1934 = vmatpush2.bf16.msra.mxu0 0
    %1935 = vmatprep.subr.bf16.mxu0 0
    %1936 = vmatpush2.bf16.msra.mxu0 0
    %1937 = vmatprep.mubr.bf16.mxu0 0
    %1938 = vmatmul.mubr.bf16.gmra.mxu0 %v1903
    %v1939 = vpop.f32.mrf.mxu0
    %v1940 = vadd.f32 %v1900, %v1939
    %v1941 = vpop.f32.mrf.mxu0
    %v1942 = vpop.f32.mrf.mxu0
    %v1943 = vpop.f32.mrf.mxu0
    %1944 = vdwg.mxu0
    %v1945 = vld [vmem:[%s10 + $0xa] sm:$0x1]
    %v1947 = vlaneseq
    %v1948 = vshrl.u32 %v1947, 7
    %v1949 = vsub.s32 0, %v1948
    %v1950 = vrot.slane %v1945, %v1949
    %v1952 = vadd.f32 %v1940, %v1950
    %v1953 = vmax.f32 %v1952, 0.0
    %v1954 = vpack.c.bf16 %v1953, %v1953
    %1955 = vrot.lane.b32.xlu0 %v1895, 96
    %v1956 = vpop.permute.xlu0 %1955
    %1957 = vrot.lane.b32.xlu0 %v1896, 96
    %v1958 = vpop.permute.xlu0 %1957
    %1961 = vrot.lane.b32.xlu0 %v1950, 96
    %v1962 = vpop.permute.xlu0 %1961
    %v1965 = vsel %vm1497, %v1954, 0
    %1967 = vmatprep.subr.bf16.mxu0 0
    %1968 = vmatpush1.bf16.msra.mxu0 0
    %1969 = vmatprep.subr.bf16.mxu0 0
    %1970 = vmatpush1.bf16.msra.mxu0 0
    %1971 = vmatprep.subr.bf16.mxu0 0
    %1972 = vmatpush1.bf16.msra.mxu0 0
    %1973 = vmatprep.subr.bf16.mxu0 0
    %1974 = vmatpush1.bf16.msra.mxu0 0
    %1975 = vmatprep.subr.bf16.mxu0 0
    %1976 = vmatpush1.bf16.msra.mxu0 0
    %1977 = vmatprep.subr.bf16.mxu0 0
    %1978 = vmatpush1.bf16.msra.mxu0 0
    %1979 = vmatprep.subr.bf16.mxu0 0
    %1980 = vmatpush1.bf16.msra.mxu0 %v1958
    %1981 = vmatprep.subr.bf16.mxu0 0
    %1982 = vmatpush1.bf16.msra.mxu0 %v1956
    %1983 = vmatprep.subr.bf16.mxu0 0
    %1984 = vmatpush2.bf16.msra.mxu0 0
    %1985 = vmatprep.subr.bf16.mxu0 0
    %1986 = vmatpush2.bf16.msra.mxu0 0
    %1987 = vmatprep.subr.bf16.mxu0 0
    %1988 = vmatpush2.bf16.msra.mxu0 0
    %1989 = vmatprep.subr.bf16.mxu0 0
    %1990 = vmatpush2.bf16.msra.mxu0 0
    %1991 = vmatprep.subr.bf16.mxu0 0
    %1992 = vmatpush2.bf16.msra.mxu0 0
    %1993 = vmatprep.subr.bf16.mxu0 0
    %1994 = vmatpush2.bf16.msra.mxu0 0
    %1995 = vmatprep.subr.bf16.mxu0 0
    %1996 = vmatpush2.bf16.msra.mxu0 0
    %1997 = vmatprep.subr.bf16.mxu0 0
    %1998 = vmatpush2.bf16.msra.mxu0 0
    %1999 = vmatprep.mubr.bf16.mxu0 0
    %2000 = vmatmul.mubr.bf16.gmra.mxu0 %v1965
    %v2001 = vpop.f32.mrf.mxu0
    %v2002 = vadd.f32 %v1962, %v2001
    %v2003 = vpop.f32.mrf.mxu0
    %v2004 = vpop.f32.mrf.mxu0
    %v2005 = vpop.f32.mrf.mxu0
    %2006 = vdwg.mxu0
    %v2007 = vpack.c.bf16 %v2002, %v2002
    %v2008 = vld [vmem:[%s10 + $0x8] sm:$0x1]
    %v2010 = vlaneseq
    %v2011 = vshrl.u32 %v2010, 7
    %v2012 = vsub.s32 0, %v2011
    %v2013 = vrot.slane %v2008, %v2012
    %2015 = vrot.lane.b32.xlu0 %v1895, 64
    %v2016 = vpop.permute.xlu0 %2015
    %2017 = vrot.lane.b32.xlu0 %v1896, 64
    %v2018 = vpop.permute.xlu0 %2017
    %v2022 = vsel %vm1497, %v2007, 0
    %2024 = vmatprep.subr.bf16.mxu0 0
    %2025 = vmatpush1.bf16.msra.mxu0 0
    %2026 = vmatprep.subr.bf16.mxu0 0
    %2027 = vmatpush1.bf16.msra.mxu0 0
    %2028 = vmatprep.subr.bf16.mxu0 0
    %2029 = vmatpush1.bf16.msra.mxu0 0
    %2030 = vmatprep.subr.bf16.mxu0 0
    %2031 = vmatpush1.bf16.msra.mxu0 0
    %2032 = vmatprep.subr.bf16.mxu0 0
    %2033 = vmatpush1.bf16.msra.mxu0 0
    %2034 = vmatprep.subr.bf16.mxu0 0
    %2035 = vmatpush1.bf16.msra.mxu0 0
    %2036 = vmatprep.subr.bf16.mxu0 0
    %2037 = vmatpush1.bf16.msra.mxu0 %v2018
    %2038 = vmatprep.subr.bf16.mxu0 0
    %2039 = vmatpush1.bf16.msra.mxu0 %v2016
    %2040 = vmatprep.subr.bf16.mxu0 0
    %2041 = vmatpush2.bf16.msra.mxu0 0
    %2042 = vmatprep.subr.bf16.mxu0 0
    %2043 = vmatpush2.bf16.msra.mxu0 0
    %2044 = vmatprep.subr.bf16.mxu0 0
    %2045 = vmatpush2.bf16.msra.mxu0 0
    %2046 = vmatprep.subr.bf16.mxu0 0
    %2047 = vmatpush2.bf16.msra.mxu0 0
    %2048 = vmatprep.subr.bf16.mxu0 0
    %2049 = vmatpush2.bf16.msra.mxu0 0
    %2050 = vmatprep.subr.bf16.mxu0 0
    %2051 = vmatpush2.bf16.msra.mxu0 0
    %2052 = vmatprep.subr.bf16.mxu0 0
    %2053 = vmatpush2.bf16.msra.mxu0 0
    %2054 = vmatprep.subr.bf16.mxu0 0
    %2055 = vmatpush2.bf16.msra.mxu0 0
    %2056 = vmatprep.mubr.bf16.mxu0 0
    %2057 = vmatmul.mubr.bf16.gmra.mxu0 %v2022
    %v2058 = vpop.f32.mrf.mxu0
    %v2059 = vadd.f32 %v2013, %v2058
    %v2060 = vpop.f32.mrf.mxu0
    %v2061 = vpop.f32.mrf.mxu0
    %v2062 = vpop.f32.mrf.mxu0
    %2063 = vdwg.mxu0
    %v2064 = vmax.f32 %v2059, 0.0
    %v2065 = vld [vmem:[%s9] sm:$0xff]
    %v2066 = vld [vmem:[%s9 + $0x8] sm:$0xff]
    %v2067 = vld [vmem:[%s9 + $0x10] sm:$0xff]
    %v2068 = vld [vmem:[%s9 + $0x18] sm:$0xff]
    %v2069 = vld [vmem:[%s9 + $0x20] sm:$0xff]
    %v2070 = vld [vmem:[%s9 + $0x28] sm:$0xff]
    %v2071 = vld [vmem:[%s9 + $0x30] sm:$0xff]
    %v2072 = vld [vmem:[%s9 + $0x38] sm:$0xff]
    %v2073 = vld [vmem:[%s9 + $0x40] sm:$0xff]
    %v2074 = vld [vmem:[%s9 + $0x48] sm:$0xff]
    %v2075 = vld [vmem:[%s9 + $0x50] sm:$0xff]
    %v2076 = vld [vmem:[%s9 + $0x58] sm:$0xff]
    %v2077 = vld [vmem:[%s9 + $0x60] sm:$0xff]
    %v2078 = vld [vmem:[%s9 + $0x68] sm:$0xff]
    %v2079 = vld [vmem:[%s9 + $0x70] sm:$0xff]
    %v2080 = vld [vmem:[%s9 + $0x78] sm:$0xff]
    %v2081 = vld [vmem:[%s9 + $0x80] sm:$0xff]
    %v2082 = vld [vmem:[%s9 + $0x88] sm:$0xff]
    %v2083 = vld [vmem:[%s9 + $0x90] sm:$0xff]
    %v2084 = vld [vmem:[%s9 + $0x98] sm:$0xff]
    %v2085 = vld [vmem:[%s9 + $0xa0] sm:$0xff]
    %v2086 = vld [vmem:[%s9 + $0xa8] sm:$0xff]
    %v2087 = vld [vmem:[%s9 + $0xb0] sm:$0xff]
    %v2088 = vld [vmem:[%s9 + $0xb8] sm:$0xff]
    %v2089 = vld [vmem:[%s9 + $0xc0] sm:$0xff]
    %v2090 = vld [vmem:[%s9 + $0xc8] sm:$0xff]
    %v2091 = vld [vmem:[%s9 + $0xd0] sm:$0xff]
    %v2092 = vld [vmem:[%s9 + $0xd8] sm:$0xff]
    %v2093 = vld [vmem:[%s9 + $0xe0] sm:$0xff]
    %v2094 = vld [vmem:[%s9 + $0xe8] sm:$0xff]
    %v2095 = vld [vmem:[%s9 + $0xf0] sm:$0xff]
    %v2096 = vld [vmem:[%s9 + $0xf8] sm:$0xff]
    %v2097 = vpack.c.bf16 %v2064, %v2064
    %v2098 = vld [vmem:[%s10] sm:$0xff]
    %v2100 = vlaneseq
    %v2101 = vshrl.u32 %v2100, 7
    %v2102 = vsub.s32 0, %v2101
    %v2103 = vrot.slane %v2098, %v2102
    %v2104 = vlaneseq
    %v2105 = vshrl.u32 %v2104, 7
    %v2106 = vsub.s32 1, %v2105
    %v2107 = vrot.slane %v2098, %v2106
    %v2108 = vlaneseq
    %v2109 = vshrl.u32 %v2108, 7
    %v2110 = vsub.s32 2, %v2109
    %v2111 = vrot.slane %v2098, %v2110
    %v2112 = vlaneseq
    %v2113 = vshrl.u32 %v2112, 7
    %v2114 = vsub.s32 3, %v2113
    %v2115 = vrot.slane %v2098, %v2114
    %v2116 = vlaneseq
    %v2117 = vshrl.u32 %v2116, 7
    %v2118 = vsub.s32 4, %v2117
    %v2119 = vrot.slane %v2098, %v2118
    %v2120 = vlaneseq
    %v2121 = vshrl.u32 %v2120, 7
    %v2122 = vsub.s32 5, %v2121
    %v2123 = vrot.slane %v2098, %v2122
    %v2124 = vlaneseq
    %v2125 = vshrl.u32 %v2124, 7
    %v2126 = vsub.s32 6, %v2125
    %v2127 = vrot.slane %v2098, %v2126
    %v2128 = vlaneseq
    %v2129 = vshrl.u32 %v2128, 7
    %v2130 = vsub.s32 7, %v2129
    %v2131 = vrot.slane %v2098, %v2130
    %v2172 = vunpack.c.l.b16 %v2065
    %v2173 = vunpack.c.h.b16 %v2065
    %v2174 = vunpack.c.l.b16 %v2066
    %v2175 = vunpack.c.h.b16 %v2066
    %v2176 = vunpack.c.l.b16 %v2067
    %v2177 = vunpack.c.h.b16 %v2067
    %v2178 = vunpack.c.l.b16 %v2068
    %v2179 = vunpack.c.h.b16 %v2068
    %v2180 = vunpack.c.l.b16 %v2069
    %v2181 = vunpack.c.h.b16 %v2069
    %v2182 = vunpack.c.l.b16 %v2070
    %v2183 = vunpack.c.h.b16 %v2070
    %v2184 = vunpack.c.l.b16 %v2071
    %v2185 = vunpack.c.h.b16 %v2071
    %v2186 = vunpack.c.l.b16 %v2072
    %v2187 = vunpack.c.h.b16 %v2072
    %v2188 = vunpack.c.l.b16 %v2073
    %v2189 = vunpack.c.h.b16 %v2073
    %v2190 = vunpack.c.l.b16 %v2074
    %v2191 = vunpack.c.h.b16 %v2074
    %v2192 = vunpack.c.l.b16 %v2075
    %v2193 = vunpack.c.h.b16 %v2075
    %v2194 = vunpack.c.l.b16 %v2076
    %v2195 = vunpack.c.h.b16 %v2076
    %v2196 = vunpack.c.l.b16 %v2077
    %v2197 = vunpack.c.h.b16 %v2077
    %v2198 = vunpack.c.l.b16 %v2078
    %v2199 = vunpack.c.h.b16 %v2078
    %v2200 = vunpack.c.l.b16 %v2079
    %v2201 = vunpack.c.h.b16 %v2079
    %v2202 = vunpack.c.l.b16 %v2080
    %v2203 = vunpack.c.h.b16 %v2080
    %v2204 = vunpack.c.l.b16 %v2081
    %v2205 = vunpack.c.h.b16 %v2081
    %v2206 = vunpack.c.l.b16 %v2082
    %v2207 = vunpack.c.h.b16 %v2082
    %v2208 = vunpack.c.l.b16 %v2083
    %v2209 = vunpack.c.h.b16 %v2083
    %v2210 = vunpack.c.l.b16 %v2084
    %v2211 = vunpack.c.h.b16 %v2084
    %v2212 = vunpack.c.l.b16 %v2085
    %v2213 = vunpack.c.h.b16 %v2085
    %v2214 = vunpack.c.l.b16 %v2086
    %v2215 = vunpack.c.h.b16 %v2086
    %v2216 = vunpack.c.l.b16 %v2087
    %v2217 = vunpack.c.h.b16 %v2087
    %v2218 = vunpack.c.l.b16 %v2088
    %v2219 = vunpack.c.h.b16 %v2088
    %v2220 = vunpack.c.l.b16 %v2089
    %v2221 = vunpack.c.h.b16 %v2089
    %v2222 = vunpack.c.l.b16 %v2090
    %v2223 = vunpack.c.h.b16 %v2090
    %v2224 = vunpack.c.l.b16 %v2091
    %v2225 = vunpack.c.h.b16 %v2091
    %v2226 = vunpack.c.l.b16 %v2092
    %v2227 = vunpack.c.h.b16 %v2092
    %v2228 = vunpack.c.l.b16 %v2093
    %v2229 = vunpack.c.h.b16 %v2093
    %v2230 = vunpack.c.l.b16 %v2094
    %v2231 = vunpack.c.h.b16 %v2094
    %v2232 = vunpack.c.l.b16 %v2095
    %v2233 = vunpack.c.h.b16 %v2095
    %v2234 = vunpack.c.l.b16 %v2096
    %v2235 = vunpack.c.h.b16 %v2096
    %v2236 = vpack.c.b16 %v2180, %v2172
    %v2237 = vpack.c.b16 %v2181, %v2173
    %v2238 = vpack.c.b16 %v2182, %v2174
    %v2239 = vpack.c.b16 %v2183, %v2175
    %v2240 = vpack.c.b16 %v2184, %v2176
    %v2241 = vpack.c.b16 %v2185, %v2177
    %v2242 = vpack.c.b16 %v2186, %v2178
    %v2243 = vpack.c.b16 %v2187, %v2179
    %v2244 = vpack.c.b16 %v2196, %v2188
    %v2245 = vpack.c.b16 %v2197, %v2189
    %v2246 = vpack.c.b16 %v2198, %v2190
    %v2247 = vpack.c.b16 %v2199, %v2191
    %v2248 = vpack.c.b16 %v2200, %v2192
    %v2249 = vpack.c.b16 %v2201, %v2193
    %v2250 = vpack.c.b16 %v2202, %v2194
    %v2251 = vpack.c.b16 %v2203, %v2195
    %v2252 = vpack.c.b16 %v2212, %v2204
    %v2253 = vpack.c.b16 %v2213, %v2205
    %v2254 = vpack.c.b16 %v2214, %v2206
    %v2255 = vpack.c.b16 %v2215, %v2207
    %v2256 = vpack.c.b16 %v2216, %v2208
    %v2257 = vpack.c.b16 %v2217, %v2209
    %v2258 = vpack.c.b16 %v2218, %v2210
    %v2259 = vpack.c.b16 %v2219, %v2211
    %v2260 = vpack.c.b16 %v2228, %v2220
    %v2261 = vpack.c.b16 %v2229, %v2221
    %v2262 = vpack.c.b16 %v2230, %v2222
    %v2263 = vpack.c.b16 %v2231, %v2223
    %v2264 = vpack.c.b16 %v2232, %v2224
    %v2265 = vpack.c.b16 %v2233, %v2225
    %v2266 = vpack.c.b16 %v2234, %v2226
    %v2267 = vpack.c.b16 %v2235, %v2227
    %v2301 = vsel %vm212, %v2097, 0
    %2303 = vmatprep.subr.bf16.mxu0 0
    %2304 = vmatpush1.bf16.msra.mxu0 0
    %2305 = vmatprep.subr.bf16.mxu0 0
    %2306 = vmatpush1.bf16.msra.mxu0 0
    %2307 = vmatprep.subr.bf16.mxu0 0
    %2308 = vmatpush1.bf16.msra.mxu0 0
    %2309 = vmatprep.subr.bf16.mxu0 0
    %2310 = vmatpush1.bf16.msra.mxu0 0
    %2311 = vmatprep.subr.bf16.mxu0 %v2261
    %2312 = vmatpush1.bf16.msra.mxu0 %v2260
    %2313 = vmatprep.subr.bf16.mxu0 %v2253
    %2314 = vmatpush1.bf16.msra.mxu0 %v2252
    %2315 = vmatprep.subr.bf16.mxu0 %v2245
    %2316 = vmatpush1.bf16.msra.mxu0 %v2244
    %2317 = vmatprep.subr.bf16.mxu0 %v2237
    %2318 = vmatpush1.bf16.msra.mxu0 %v2236
    %2319 = vmatprep.subr.bf16.mxu0 0
    %2320 = vmatpush2.bf16.msra.mxu0 0
    %2321 = vmatprep.subr.bf16.mxu0 0
    %2322 = vmatpush2.bf16.msra.mxu0 0
    %2323 = vmatprep.subr.bf16.mxu0 0
    %2324 = vmatpush2.bf16.msra.mxu0 0
    %2325 = vmatprep.subr.bf16.mxu0 0
    %2326 = vmatpush2.bf16.msra.mxu0 0
    %2327 = vmatprep.subr.bf16.mxu0 0
    %2328 = vmatpush2.bf16.msra.mxu0 0
    %2329 = vmatprep.subr.bf16.mxu0 0
    %2330 = vmatpush2.bf16.msra.mxu0 0
    %2331 = vmatprep.subr.bf16.mxu0 0
    %2332 = vmatpush2.bf16.msra.mxu0 0
    %2333 = vmatprep.subr.bf16.mxu0 0
    %2334 = vmatpush2.bf16.msra.mxu0 0
    %2335 = vmatprep.mubr.bf16.mxu0 0
    %2336 = vmatmul.mubr.bf16.gmra.mxu0 %v2301
    %v2337 = vpop.f32.mrf.mxu0
    %v2338 = vadd.f32 %v2103, %v2337
    %v2339 = vpop.f32.mrf.mxu0
    %v2340 = vadd.f32 %v2107, %v2339
    %v2341 = vpop.f32.mrf.mxu0
    %v2342 = vpop.f32.mrf.mxu0
    %2343 = vdwg.mxu0
    %2344 = vmatprep.subr.bf16.mxu0 0
    %2345 = vmatpush1.bf16.msra.mxu0 0
    %2346 = vmatprep.subr.bf16.mxu0 0
    %2347 = vmatpush1.bf16.msra.mxu0 0
    %2348 = vmatprep.subr.bf16.mxu0 0
    %2349 = vmatpush1.bf16.msra.mxu0 0
    %2350 = vmatprep.subr.bf16.mxu0 0
    %2351 = vmatpush1.bf16.msra.mxu0 0
    %2352 = vmatprep.subr.bf16.mxu0 %v2263
    %2353 = vmatpush1.bf16.msra.mxu0 %v2262
    %2354 = vmatprep.subr.bf16.mxu0 %v2255
    %2355 = vmatpush1.bf16.msra.mxu0 %v2254
    %2356 = vmatprep.subr.bf16.mxu0 %v2247
    %2357 = vmatpush1.bf16.msra.mxu0 %v2246
    %2358 = vmatprep.subr.bf16.mxu0 %v2239
    %2359 = vmatpush1.bf16.msra.mxu0 %v2238
    %2360 = vmatprep.subr.bf16.mxu0 0
    %2361 = vmatpush2.bf16.msra.mxu0 0
    %2362 = vmatprep.subr.bf16.mxu0 0
    %2363 = vmatpush2.bf16.msra.mxu0 0
    %2364 = vmatprep.subr.bf16.mxu0 0
    %2365 = vmatpush2.bf16.msra.mxu0 0
    %2366 = vmatprep.subr.bf16.mxu0 0
    %2367 = vmatpush2.bf16.msra.mxu0 0
    %2368 = vmatprep.subr.bf16.mxu0 0
    %2369 = vmatpush2.bf16.msra.mxu0 0
    %2370 = vmatprep.subr.bf16.mxu0 0
    %2371 = vmatpush2.bf16.msra.mxu0 0
    %2372 = vmatprep.subr.bf16.mxu0 0
    %2373 = vmatpush2.bf16.msra.mxu0 0
    %2374 = vmatprep.subr.bf16.mxu0 0
    %2375 = vmatpush2.bf16.msra.mxu0 0
    %2376 = vmatprep.mubr.bf16.mxu0 0
    %2377 = vmatmul.mubr.bf16.gmra.mxu0 %v2301
    %v2378 = vpop.f32.mrf.mxu0
    %v2379 = vadd.f32 %v2111, %v2378
    %v2380 = vpop.f32.mrf.mxu0
    %v2381 = vadd.f32 %v2115, %v2380
    %v2382 = vpop.f32.mrf.mxu0
    %v2383 = vpop.f32.mrf.mxu0
    %2384 = vdwg.mxu0
    %2385 = vmatprep.subr.bf16.mxu0 0
    %2386 = vmatpush1.bf16.msra.mxu0 0
    %2387 = vmatprep.subr.bf16.mxu0 0
    %2388 = vmatpush1.bf16.msra.mxu0 0
    %2389 = vmatprep.subr.bf16.mxu0 0
    %2390 = vmatpush1.bf16.msra.mxu0 0
    %2391 = vmatprep.subr.bf16.mxu0 0
    %2392 = vmatpush1.bf16.msra.mxu0 0
    %2393 = vmatprep.subr.bf16.mxu0 %v2265
    %2394 = vmatpush1.bf16.msra.mxu0 %v2264
    %2395 = vmatprep.subr.bf16.mxu0 %v2257
    %2396 = vmatpush1.bf16.msra.mxu0 %v2256
    %2397 = vmatprep.subr.bf16.mxu0 %v2249
    %2398 = vmatpush1.bf16.msra.mxu0 %v2248
    %2399 = vmatprep.subr.bf16.mxu0 %v2241
    %2400 = vmatpush1.bf16.msra.mxu0 %v2240
    %2401 = vmatprep.subr.bf16.mxu0 0
    %2402 = vmatpush2.bf16.msra.mxu0 0
    %2403 = vmatprep.subr.bf16.mxu0 0
    %2404 = vmatpush2.bf16.msra.mxu0 0
    %2405 = vmatprep.subr.bf16.mxu0 0
    %2406 = vmatpush2.bf16.msra.mxu0 0
    %2407 = vmatprep.subr.bf16.mxu0 0
    %2408 = vmatpush2.bf16.msra.mxu0 0
    %2409 = vmatprep.subr.bf16.mxu0 0
    %2410 = vmatpush2.bf16.msra.mxu0 0
    %2411 = vmatprep.subr.bf16.mxu0 0
    %2412 = vmatpush2.bf16.msra.mxu0 0
    %2413 = vmatprep.subr.bf16.mxu0 0
    %2414 = vmatpush2.bf16.msra.mxu0 0
    %2415 = vmatprep.subr.bf16.mxu0 0
    %2416 = vmatpush2.bf16.msra.mxu0 0
    %2417 = vmatprep.mubr.bf16.mxu0 0
    %2418 = vmatmul.mubr.bf16.gmra.mxu0 %v2301
    %v2419 = vpop.f32.mrf.mxu0
    %v2420 = vadd.f32 %v2119, %v2419
    %v2421 = vpop.f32.mrf.mxu0
    %v2422 = vadd.f32 %v2123, %v2421
    %v2423 = vpop.f32.mrf.mxu0
    %v2424 = vpop.f32.mrf.mxu0
    %2425 = vdwg.mxu0
    %2426 = vmatprep.subr.bf16.mxu0 0
    %2427 = vmatpush1.bf16.msra.mxu0 0
    %2428 = vmatprep.subr.bf16.mxu0 0
    %2429 = vmatpush1.bf16.msra.mxu0 0
    %2430 = vmatprep.subr.bf16.mxu0 0
    %2431 = vmatpush1.bf16.msra.mxu0 0
    %2432 = vmatprep.subr.bf16.mxu0 0
    %2433 = vmatpush1.bf16.msra.mxu0 0
    %2434 = vmatprep.subr.bf16.mxu0 %v2267
    %2435 = vmatpush1.bf16.msra.mxu0 %v2266
    %2436 = vmatprep.subr.bf16.mxu0 %v2259
    %2437 = vmatpush1.bf16.msra.mxu0 %v2258
    %2438 = vmatprep.subr.bf16.mxu0 %v2251
    %2439 = vmatpush1.bf16.msra.mxu0 %v2250
    %2440 = vmatprep.subr.bf16.mxu0 %v2243
    %2441 = vmatpush1.bf16.msra.mxu0 %v2242
    %2442 = vmatprep.subr.bf16.mxu0 0
    %2443 = vmatpush2.bf16.msra.mxu0 0
    %2444 = vmatprep.subr.bf16.mxu0 0
    %2445 = vmatpush2.bf16.msra.mxu0 0
    %2446 = vmatprep.subr.bf16.mxu0 0
    %2447 = vmatpush2.bf16.msra.mxu0 0
    %2448 = vmatprep.subr.bf16.mxu0 0
    %2449 = vmatpush2.bf16.msra.mxu0 0
    %2450 = vmatprep.subr.bf16.mxu0 0
    %2451 = vmatpush2.bf16.msra.mxu0 0
    %2452 = vmatprep.subr.bf16.mxu0 0
    %2453 = vmatpush2.bf16.msra.mxu0 0
    %2454 = vmatprep.subr.bf16.mxu0 0
    %2455 = vmatpush2.bf16.msra.mxu0 0
    %2456 = vmatprep.subr.bf16.mxu0 0
    %2457 = vmatpush2.bf16.msra.mxu0 0
    %2458 = vmatprep.mubr.bf16.mxu0 0
    %2459 = vmatmul.mubr.bf16.gmra.mxu0 %v2301
    %v2460 = vpop.f32.mrf.mxu0
    %v2461 = vadd.f32 %v2127, %v2460
    %v2462 = vpop.f32.mrf.mxu0
    %v2463 = vadd.f32 %v2131, %v2462
    %v2464 = vpop.f32.mrf.mxu0
    %v2465 = vpop.f32.mrf.mxu0
    %2466 = vdwg.mxu0
    %v2475 = vcombine.low %v2338, %v2340
    %v2476 = vcombine.low %v2379, %v2381
    %v2478 = vunpack.c.l.s4 1983009808
    %v2479 = vunpack.c.0.s8 %v2478
    %v2480 = vlaneseq
    %v2481 = vshrl.u32 %v2480, 7
    %v2482 = vsub.s32 %v2479, %v2481
    %v2483 = vrot.slane %v2475, %v2482
    %v2485 = vunpack.c.l.s4 1983009808
    %v2486 = vunpack.c.0.s8 %v2485
    %v2487 = vlaneseq
    %v2488 = vshrl.u32 %v2487, 7
    %v2489 = vsub.s32 %v2486, %v2488
    %v2490 = vrot.slane %v2476, %v2489
    %v2491 = vcombine.low %v2483, %v2490
    %v2492 = vcombine.low %v2420, %v2422
    %v2493 = vcombine.low %v2461, %v2463
    %v2495 = vunpack.c.l.s4 1983009808
    %v2496 = vunpack.c.0.s8 %v2495
    %v2497 = vlaneseq
    %v2498 = vshrl.u32 %v2497, 7
    %v2499 = vsub.s32 %v2496, %v2498
    %v2500 = vrot.slane %v2492, %v2499
    %v2502 = vunpack.c.l.s4 1983009808
    %v2503 = vunpack.c.0.s8 %v2502
    %v2504 = vlaneseq
    %v2505 = vshrl.u32 %v2504, 7
    %v2506 = vsub.s32 %v2503, %v2505
    %v2507 = vrot.slane %v2493, %v2506
    %v2508 = vcombine.low %v2500, %v2507
    %2511 = vst [vmem:[%s11] sm:$0xff] %v2491
    %2512 = vst [vmem:[%s11 + $0x8] sm:$0xff] %v2508
    // Predicated region
    $region46: #{peppernet_cconv_vae_forward.1} parent=1 // pred_check
      _
    $region47: #{peppernet_cconv_vae_forward.1} parent=1 // pred_check_branch
      %2514 = sbr.rel (0) target = $region49
    $region48: #{peppernet_cconv_vae_forward.1} parent=1 // pred_region
      _
    $region49: #{peppernet_cconv_vae_forward.1} parent=1 // pred_fallthru
      _
    // Predicated region
    $region50: #{peppernet_cconv_vae_forward.1} parent=1 // pred_check
      _
    $region51: #{peppernet_cconv_vae_forward.1} parent=1 // pred_check_branch
      %2516 = sbr.rel (0) target = $region53
    $region52: #{peppernet_cconv_vae_forward.1} parent=1 // pred_region
      %s2518 = ssub.s32 32, 32
      %2519 = vsyncadd [#allocation4], %s2518
      %s2521 = sshll.u32 [#allocation3], 4
      %s2522 = int_to_ptr.vmem [resolvable:$true] %s2521
      %2524 = dma.vmem_to_hbm [thread:$0]  %s2522, 32, %s12, [#allocation4]
    $region53: #{peppernet_cconv_vae_forward.1} parent=1 // pred_fallthru
      _
    // Predicated region
    $region54: #{peppernet_cconv_vae_forward.1} parent=1 // pred_check
      _
    $region55: #{peppernet_cconv_vae_forward.1} parent=1 // pred_check_branch
      %2526 = sbr.rel (0) target = $region57
    $region56: #{peppernet_cconv_vae_forward.1} parent=1 // pred_region
      _
    $region57: #{peppernet_cconv_vae_forward.1} parent=1 // pred_fallthru
      _
    // Predicated region
    $region58: #{peppernet_cconv_vae_forward.1} parent=1 // pred_check
      _
    $region59: #{peppernet_cconv_vae_forward.1} parent=1 // pred_check_branch
      %2528 = sbr.rel (0) target = $region61
    $region60: #{peppernet_cconv_vae_forward.1} parent=1 // pred_region
      %2529 = dma.done [#allocation4], 32
    $region61: #{peppernet_cconv_vae_forward.1} parent=1 // pred_fallthru
      _
    %2530 = vsyncpa [#allocation4], 1

</llo_original>
